<compile_context>
chip_gen: v6e
topology: v6e:2x2x1
jax: 0.10.0
libtpu: 0.0.40
codegen_flags: <defaults>
</compile_context>

<pallas_src>
import functools
import math

import jax
import jax.numpy as jnp
from jax.experimental import pallas as pl
from jax.experimental.pallas import tpu as pltpu


def _round_up(x: int, m: int) -> int:
    return (x + m - 1) // m * m


def _round_down(x: int, m: int) -> int:
    return x // m * m


def _conv3d_prelu_kernel(xp_ref, w_ref, b_ref, a_ref, o_ref, r_ref, *,
                         ks, Hp, Wp, use_activ):
    """One (batch, L-tile) grid step.

    xp_ref: (1, 1, Cin_pad, L_tile + s_max)  lane-dense input chunk incl. halo
    w_ref : (Cout, K2)   packed im2col weight, tap-major / channel-minor
    b_ref : (Cout, 1)    conv bias (f32)
    a_ref : (Cout, 1)    PReLU per-channel slope (f32)
    o_ref : (1, Cout, L_tile)
    r_ref : (K2, L_tile) VMEM scratch (compute dtype): stacked shifted copies
    """
    cin_pad = xp_ref.shape[2]
    l_tile = o_ref.shape[2]

    # im2col via constant lane shifts: tap (kd,kh,kw) is the flat input shifted
    # by kd*Hp*Wp + kh*Wp + kw.  Every slice is a static, fixed-length lane
    # slice of a lane-dense array (no strided gather, no relayout).  Taps that
    # would cross Hp/Wp row boundaries only feed padded-halo output columns,
    # which the wrapper discards; the per-tile s_max halo keeps reads in-bounds.
    for kd in range(ks):
        for kh in range(ks):
            for kw in range(ks):
                o = (kd * ks + kh) * ks + kw
                s = kd * Hp * Wp + kh * Wp + kw
                r_ref[o * cin_pad:(o + 1) * cin_pad, :] = xp_ref[0, 0, :, s:s + l_tile]

    # Single fused matmul: (Cout, K2) @ (K2, L_tile) -> (Cout, L_tile), f32 acc.
    acc = jnp.dot(w_ref[...], r_ref[...], preferred_element_type=jnp.float32)

    acc = acc + b_ref[...]                                   # bias, lane-broadcast
    if use_activ:
        acc = jnp.where(acc > 0, acc, acc * a_ref[...])      # per-channel PReLU
    o_ref[0] = acc.astype(o_ref.dtype)


def forward_block(x, w, b, alpha, ks, use_activ=True,
                  compute_dtype=jnp.bfloat16, l_tile=None,
                  vmem_budget_bytes=40 << 20):
    """x: (N, Cin, D, H, W) float32 (PyTorch NCDHW); returns (N, Cout, Do, Ho, Wo).

    compute_dtype: dtype of the input chunks / im2col scratch / weights fed to
      the MXU (accumulation is always f32).  bf16 is the right default on
      v6e/v7x (and the MXU path is fine on v5e); use f32 on v5e if the bf16
      odd-lane shifts in the im2col build show up.
    l_tile: lane-tile of the flattened padded spatial dim (rounded up to 128).
      If None it is sized from vmem_budget_bytes (default targets v7x 64 MiB).
    """
    N, Cin, D, H, W = x.shape
    Cout = w.shape[0]
    pad = ks // 2
    Dp, Hp, Wp = D + 2 * pad, H + 2 * pad, W + 2 * pad
    Do, Ho, Wo = Dp - ks + 1, Hp - ks + 1, Wp - ks + 1
    L = Dp * Hp * Wp
    s_max = (ks - 1) * (Hp * Wp + Wp + 1)       # largest flat tap offset
    Cin_pad = _round_up(Cin, 8)                 # align channel rows to sublanes
    K2 = ks * ks * ks * Cin_pad
    elt = jnp.dtype(compute_dtype).itemsize

    # ---- choose L_tile for the VMEM budget (v7x: 64 MiB physical) -----------
    if l_tile is None:
        per_lane = K2 * elt + 2 * Cin_pad * elt + 2 * Cout * 4
        fixed = 2 * Cin_pad * s_max * elt + 2 * Cout * K2 * elt + 8 * Cout * 4
        max_lanes = max(128, (vmem_budget_bytes - fixed) // per_lane)
        l_tile = min(_round_up(L, 128), max(128, _round_down(max_lanes, 128)))
        # With a single batch element, make sure both v7x TensorCores get work.
        if N == 1 and L > 128 and pl.cdiv(L, l_tile) < 2:
            l_tile = max(128, _round_up(pl.cdiv(L, 2), 128))
    else:
        l_tile = max(128, _round_up(l_tile, 128))
    T = pl.cdiv(L, l_tile)                      # number of L-tiles
    L_chunk = l_tile + s_max                    # per-tile input lanes incl. halo
    L_out = T * l_tile                          # padded output lane extent

    # ---- wrapper glue (one fused pad/stack pass, in compute dtype) ----------
    xp = jnp.pad(x.astype(compute_dtype),
                 ((0, 0), (0, 0), (pad, pad), (pad, pad), (pad, pad)),
                 mode="wrap")                                # (N, Cin, Dp, Hp, Wp)
    xp = xp.reshape(N, Cin, L)
    ext = L_out + s_max - L                     # zero cols -> only discarded outputs
    xp = jnp.pad(xp, ((0, 0), (0, Cin_pad - Cin), (0, ext)))  # (N, Cin_pad, L_out+s_max)
    # Overlapped L-tiles, each carrying its own s_max halo.
    xp_tiles = jnp.stack(
        [xp[:, :, j * l_tile: j * l_tile + L_chunk] for j in range(T)],
        axis=1)                                              # (N, T, Cin_pad, L_chunk)

    # Packed im2col weight (Cout, K2), tap-major / channel-minor, cast ONCE here.
    w2 = jnp.transpose(w, (0, 2, 3, 4, 1))                   # (Cout, ks,ks,ks, Cin)
    if Cin_pad != Cin:
        w2 = jnp.pad(w2, ((0, 0),) * 4 + ((0, Cin_pad - Cin),))
    w2 = w2.reshape(Cout, K2).astype(compute_dtype)
    b2 = b.reshape(Cout, 1).astype(jnp.float32)
    a2 = alpha.reshape(Cout, 1).astype(jnp.float32)

    kernel = functools.partial(_conv3d_prelu_kernel, ks=ks, Hp=Hp, Wp=Wp,
                               use_activ=use_activ)

    # ---- VMEM accounting & cost hint ----------------------------------------
    need = (K2 * l_tile * elt                    # im2col scratch
            + 2 * Cin_pad * L_chunk * elt        # double-buffered input block
            + 2 * Cout * l_tile * 4              # double-buffered output block
            + 2 * Cout * K2 * elt                # weight block
            + 8 * Cout * 4)                      # bias + alpha
    vmem_limit = int(min(64 << 20, max(32 << 20, 2 * need)))

    flops = 2 * N * T * l_tile * Cout * K2 + 3 * N * T * l_tile * Cout
    bytes_accessed = (N * T * Cin_pad * L_chunk * elt + Cout * K2 * elt
                      + 2 * Cout * 4 + N * Cout * L_out * 4)

    out_wide = pl.pallas_call(
        kernel,
        out_shape=jax.ShapeDtypeStruct((N, Cout, L_out), jnp.float32),
        grid_spec=pltpu.PrefetchScalarGridSpec(
            num_scalar_prefetch=0,
            grid=(N, T),
            in_specs=[
                pl.BlockSpec((1, 1, Cin_pad, L_chunk), lambda n, j: (n, j, 0, 0)),
                pl.BlockSpec((Cout, K2), lambda n, j: (0, 0)),
                pl.BlockSpec((Cout, 1), lambda n, j: (0, 0)),
                pl.BlockSpec((Cout, 1), lambda n, j: (0, 0)),
            ],
            out_specs=pl.BlockSpec((1, Cout, l_tile), lambda n, j: (n, 0, j)),
            scratch_shapes=[pltpu.VMEM((K2, l_tile), compute_dtype)],
        ),
        compiler_params=pltpu.CompilerParams(
            dimension_semantics=("parallel", "parallel"),
            vmem_limit_bytes=vmem_limit),
        cost_estimate=pl.CostEstimate(
            flops=flops, transcendentals=0, bytes_accessed=bytes_accessed),
    )(xp_tiles, w2, b2, a2)

    # Channels-first already; drop padded-halo columns (no transpose).
    # TODO(synk): let the consumer accept the padded slab to skip this crop pass.
    out = out_wide[:, :, :L].reshape(N, Cout, Dp, Hp, Wp)[:, :, :Do, :Ho, :Wo]
    return out


def _reference(x, w, b, alpha, ks, use_activ=True):
    """Plain-JAX reference matching the PyTorch module semantics."""
    pad = ks // 2
    xp = jnp.pad(x, ((0, 0), (0, 0), (pad, pad), (pad, pad), (pad, pad)),
                 mode="wrap")
    y = jax.lax.conv_general_dilated(
        xp, w, window_strides=(1, 1, 1), padding="VALID",
        dimension_numbers=("NCDHW", "OIDHW", "NCDHW"))
    y = y + b[None, :, None, None, None]
    if use_activ:
        a = alpha[None, :, None, None, None]
        y = jnp.where(y > 0, y, y * a)
    return y


if __name__ == "__main__":
    key = jax.random.PRNGKey(0)
    N, Cin, Cout, ks = 2, 4, 8, 3
    D = H = W = 8

    k_x, k_w, k_b = jax.random.split(key, 3)
    x = jax.random.normal(k_x, (N, Cin, D, H, W), jnp.float32)

    # Deterministic init mimicking torch.nn.Conv3d default (uniform +-1/sqrt(fan_in))
    # and torch.nn.PReLU default slope 0.25.
    fan_in = Cin * ks ** 3
    bound = 1.0 / math.sqrt(fan_in)
    w = jax.random.uniform(k_w, (Cout, Cin, ks, ks, ks), jnp.float32, -bound, bound)
    b = jax.random.uniform(k_b, (Cout,), jnp.float32, -bound, bound)
    alpha = jnp.full((Cout,), 0.25, jnp.float32)

    ref = _reference(x, w, b, alpha, ks, use_activ=True)

    configs = [
        ("bf16/auto-tile", dict(compute_dtype=jnp.bfloat16), 3e-2, 3e-2),
        ("bf16/L_tile=512", dict(compute_dtype=jnp.bfloat16, l_tile=512), 3e-2, 3e-2),
        ("f32/L_tile=512", dict(compute_dtype=jnp.float32, l_tile=512), 1e-4, 1e-4),
    ]
    for name, kw, rtol, atol in configs:
        out = jax.block_until_ready(
            forward_block(x, w, b, alpha, ks, use_activ=True, **kw))
        if out.shape != ref.shape:
            raise AssertionError(f"[{name}] shape {out.shape} != {ref.shape}")
        if not jnp.allclose(out, ref, rtol=rtol, atol=atol):
            raise AssertionError(
                f"[{name}] mismatch: max abs err = "
                f"{float(jnp.max(jnp.abs(out - ref)))}")

    # Also exercise the no-activation branch on the exact f32 path.
    ref_na = _reference(x, w, b, alpha, ks, use_activ=False)
    out_na = jax.block_until_ready(
        forward_block(x, w, b, alpha, ks, use_activ=False,
                      compute_dtype=jnp.float32, l_tile=512))
    if not jnp.allclose(out_na, ref_na, rtol=1e-4, atol=1e-4):
        raise AssertionError(
            f"[f32/no-activ] mismatch: max abs err = "
            f"{float(jnp.max(jnp.abs(out_na - ref_na)))}")

    print("KERNEL_OK")
</pallas_src>

<mosaic_0001>
module attributes {stable_mosaic.version = 11 : i64} {
  func.func @_conv3d_prelu_kernel(%arg0: i32, %arg1: i32, %arg2: memref<1x1x8x1246xbf16, #tpu.memory_space<vmem>>, %arg3: memref<8x216xbf16, #tpu.memory_space<vmem>>, %arg4: memref<8x1xf32, #tpu.memory_space<vmem>>, %arg5: memref<8x1xf32, #tpu.memory_space<vmem>>, %arg6: memref<1x8x1024xf32, #tpu.memory_space<vmem>>, %arg7: memref<216x1024xbf16, #tpu.memory_space<vmem>>) attributes {dimension_semantics = [#tpu.dimension_semantics<parallel>, #tpu.dimension_semantics<parallel>], iteration_bounds = array<i64: 2, 1>, scalar_prefetch = 0 : i64, scratch_operands = 1 : i64, tpu.core_type = #tpu.core_type<tc>, window_params = [{transform_indices = @transform_0, window_bounds = array<i64: 1, 1, 8, 1246>}, {pipeline_mode = #tpu.pipeline_mode<synchronous>, transform_indices = @transform_1, window_bounds = array<i64: 8, 216>}, {pipeline_mode = #tpu.pipeline_mode<synchronous>, transform_indices = @transform_2, window_bounds = array<i64: 8, 1>}, {pipeline_mode = #tpu.pipeline_mode<synchronous>, transform_indices = @transform_3, window_bounds = array<i64: 8, 1>}, {transform_indices = @transform_4, window_bounds = array<i64: 1, 8, 1024>}]} {
    %c0 = arith.constant 0 : index
    %c0_0 = arith.constant 0 : index
    %c0_1 = arith.constant 0 : index
    %c0_2 = arith.constant 0 : index
    %0 = vector.load %arg2[%c0, %c0_0, %c0_1, %c0_2] : memref<1x1x8x1246xbf16, #tpu.memory_space<vmem>>, vector<1x1x8x1024xbf16>
    %1 = vector.shape_cast %0 : vector<1x1x8x1024xbf16> to vector<8x1024xbf16>
    %c0_3 = arith.constant 0 : index
    %c0_4 = arith.constant 0 : index
    %2 = vector.load %arg7[%c0_3, %c0_4] : memref<216x1024xbf16, #tpu.memory_space<vmem>>, vector<8x1024xbf16>
    tpu.vector_store %arg7[%c0_3, %c0_4], %1 {strides = array<i32>} : memref<216x1024xbf16, #tpu.memory_space<vmem>>, vector<8x1024xbf16>,
    %c0_5 = arith.constant 0 : index
    %c0_6 = arith.constant 0 : index
    %c0_7 = arith.constant 0 : index
    %c1 = arith.constant 1 : index
    %3 = vector.load %arg2[%c0_5, %c0_6, %c0_7, %c1] : memref<1x1x8x1246xbf16, #tpu.memory_space<vmem>>, vector<1x1x8x1024xbf16>
    %4 = vector.shape_cast %3 : vector<1x1x8x1024xbf16> to vector<8x1024xbf16>
    %c8 = arith.constant 8 : index
    %c0_8 = arith.constant 0 : index
    %5 = vector.load %arg7[%c8, %c0_8] : memref<216x1024xbf16, #tpu.memory_space<vmem>>, vector<8x1024xbf16>
    tpu.vector_store %arg7[%c8, %c0_8], %4 {strides = array<i32>} : memref<216x1024xbf16, #tpu.memory_space<vmem>>, vector<8x1024xbf16>,
    %c0_9 = arith.constant 0 : index
    %c0_10 = arith.constant 0 : index
    %c0_11 = arith.constant 0 : index
    %c2 = arith.constant 2 : index
    %6 = vector.load %arg2[%c0_9, %c0_10, %c0_11, %c2] : memref<1x1x8x1246xbf16, #tpu.memory_space<vmem>>, vector<1x1x8x1024xbf16>
    %7 = vector.shape_cast %6 : vector<1x1x8x1024xbf16> to vector<8x1024xbf16>
    %c16 = arith.constant 16 : index
    %c0_12 = arith.constant 0 : index
    %8 = vector.load %arg7[%c16, %c0_12] : memref<216x1024xbf16, #tpu.memory_space<vmem>>, vector<8x1024xbf16>
    tpu.vector_store %arg7[%c16, %c0_12], %7 {strides = array<i32>} : memref<216x1024xbf16, #tpu.memory_space<vmem>>, vector<8x1024xbf16>,
    %c0_13 = arith.constant 0 : index
    %c0_14 = arith.constant 0 : index
    %c0_15 = arith.constant 0 : index
    %c10 = arith.constant 10 : index
    %9 = vector.load %arg2[%c0_13, %c0_14, %c0_15, %c10] : memref<1x1x8x1246xbf16, #tpu.memory_space<vmem>>, vector<1x1x8x1024xbf16>
    %10 = vector.shape_cast %9 : vector<1x1x8x1024xbf16> to vector<8x1024xbf16>
    %c24 = arith.constant 24 : index
    %c0_16 = arith.constant 0 : index
    %11 = vector.load %arg7[%c24, %c0_16] : memref<216x1024xbf16, #tpu.memory_space<vmem>>, vector<8x1024xbf16>
    tpu.vector_store %arg7[%c24, %c0_16], %10 {strides = array<i32>} : memref<216x1024xbf16, #tpu.memory_space<vmem>>, vector<8x1024xbf16>,
    %c0_17 = arith.constant 0 : index
    %c0_18 = arith.constant 0 : index
    %c0_19 = arith.constant 0 : index
    %c11 = arith.constant 11 : index
    %12 = vector.load %arg2[%c0_17, %c0_18, %c0_19, %c11] : memref<1x1x8x1246xbf16, #tpu.memory_space<vmem>>, vector<1x1x8x1024xbf16>
    %13 = vector.shape_cast %12 : vector<1x1x8x1024xbf16> to vector<8x1024xbf16>
    %c32 = arith.constant 32 : index
    %c0_20 = arith.constant 0 : index
    %14 = vector.load %arg7[%c32, %c0_20] : memref<216x1024xbf16, #tpu.memory_space<vmem>>, vector<8x1024xbf16>
    tpu.vector_store %arg7[%c32, %c0_20], %13 {strides = array<i32>} : memref<216x1024xbf16, #tpu.memory_space<vmem>>, vector<8x1024xbf16>,
    %c0_21 = arith.constant 0 : index
    %c0_22 = arith.constant 0 : index
    %c0_23 = arith.constant 0 : index
    %c12 = arith.constant 12 : index
    %15 = vector.load %arg2[%c0_21, %c0_22, %c0_23, %c12] : memref<1x1x8x1246xbf16, #tpu.memory_space<vmem>>, vector<1x1x8x1024xbf16>
    %16 = vector.shape_cast %15 : vector<1x1x8x1024xbf16> to vector<8x1024xbf16>
    %c40 = arith.constant 40 : index
    %c0_24 = arith.constant 0 : index
    %17 = vector.load %arg7[%c40, %c0_24] : memref<216x1024xbf16, #tpu.memory_space<vmem>>, vector<8x1024xbf16>
    tpu.vector_store %arg7[%c40, %c0_24], %16 {strides = array<i32>} : memref<216x1024xbf16, #tpu.memory_space<vmem>>, vector<8x1024xbf16>,
    %c0_25 = arith.constant 0 : index
    %c0_26 = arith.constant 0 : index
    %c0_27 = arith.constant 0 : index
    %c20 = arith.constant 20 : index
    %18 = vector.load %arg2[%c0_25, %c0_26, %c0_27, %c20] : memref<1x1x8x1246xbf16, #tpu.memory_space<vmem>>, vector<1x1x8x1024xbf16>
    %19 = vector.shape_cast %18 : vector<1x1x8x1024xbf16> to vector<8x1024xbf16>
    %c48 = arith.constant 48 : index
    %c0_28 = arith.constant 0 : index
    %20 = vector.load %arg7[%c48, %c0_28] : memref<216x1024xbf16, #tpu.memory_space<vmem>>, vector<8x1024xbf16>
    tpu.vector_store %arg7[%c48, %c0_28], %19 {strides = array<i32>} : memref<216x1024xbf16, #tpu.memory_space<vmem>>, vector<8x1024xbf16>,
    %c0_29 = arith.constant 0 : index
    %c0_30 = arith.constant 0 : index
    %c0_31 = arith.constant 0 : index
    %c21 = arith.constant 21 : index
    %21 = vector.load %arg2[%c0_29, %c0_30, %c0_31, %c21] : memref<1x1x8x1246xbf16, #tpu.memory_space<vmem>>, vector<1x1x8x1024xbf16>
    %22 = vector.shape_cast %21 : vector<1x1x8x1024xbf16> to vector<8x1024xbf16>
    %c56 = arith.constant 56 : index
    %c0_32 = arith.constant 0 : index
    %23 = vector.load %arg7[%c56, %c0_32] : memref<216x1024xbf16, #tpu.memory_space<vmem>>, vector<8x1024xbf16>
    tpu.vector_store %arg7[%c56, %c0_32], %22 {strides = array<i32>} : memref<216x1024xbf16, #tpu.memory_space<vmem>>, vector<8x1024xbf16>,
    %c0_33 = arith.constant 0 : index
    %c0_34 = arith.constant 0 : index
    %c0_35 = arith.constant 0 : index
    %c22 = arith.constant 22 : index
    %24 = vector.load %arg2[%c0_33, %c0_34, %c0_35, %c22] : memref<1x1x8x1246xbf16, #tpu.memory_space<vmem>>, vector<1x1x8x1024xbf16>
    %25 = vector.shape_cast %24 : vector<1x1x8x1024xbf16> to vector<8x1024xbf16>
    %c64 = arith.constant 64 : index
    %c0_36 = arith.constant 0 : index
    %26 = vector.load %arg7[%c64, %c0_36] : memref<216x1024xbf16, #tpu.memory_space<vmem>>, vector<8x1024xbf16>
    tpu.vector_store %arg7[%c64, %c0_36], %25 {strides = array<i32>} : memref<216x1024xbf16, #tpu.memory_space<vmem>>, vector<8x1024xbf16>,
    %c0_37 = arith.constant 0 : index
    %c0_38 = arith.constant 0 : index
    %c0_39 = arith.constant 0 : index
    %c100 = arith.constant 100 : index
    %27 = vector.load %arg2[%c0_37, %c0_38, %c0_39, %c100] : memref<1x1x8x1246xbf16, #tpu.memory_space<vmem>>, vector<1x1x8x1024xbf16>
    %28 = vector.shape_cast %27 : vector<1x1x8x1024xbf16> to vector<8x1024xbf16>
    %c72 = arith.constant 72 : index
    %c0_40 = arith.constant 0 : index
    %29 = vector.load %arg7[%c72, %c0_40] : memref<216x1024xbf16, #tpu.memory_space<vmem>>, vector<8x1024xbf16>
    tpu.vector_store %arg7[%c72, %c0_40], %28 {strides = array<i32>} : memref<216x1024xbf16, #tpu.memory_space<vmem>>, vector<8x1024xbf16>,
    %c0_41 = arith.constant 0 : index
    %c0_42 = arith.constant 0 : index
    %c0_43 = arith.constant 0 : index
    %c101 = arith.constant 101 : index
    %30 = vector.load %arg2[%c0_41, %c0_42, %c0_43, %c101] : memref<1x1x8x1246xbf16, #tpu.memory_space<vmem>>, vector<1x1x8x1024xbf16>
    %31 = vector.shape_cast %30 : vector<1x1x8x1024xbf16> to vector<8x1024xbf16>
    %c80 = arith.constant 80 : index
    %c0_44 = arith.constant 0 : index
    %32 = vector.load %arg7[%c80, %c0_44] : memref<216x1024xbf16, #tpu.memory_space<vmem>>, vector<8x1024xbf16>
    tpu.vector_store %arg7[%c80, %c0_44], %31 {strides = array<i32>} : memref<216x1024xbf16, #tpu.memory_space<vmem>>, vector<8x1024xbf16>,
    %c0_45 = arith.constant 0 : index
    %c0_46 = arith.constant 0 : index
    %c0_47 = arith.constant 0 : index
    %c102 = arith.constant 102 : index
    %33 = vector.load %arg2[%c0_45, %c0_46, %c0_47, %c102] : memref<1x1x8x1246xbf16, #tpu.memory_space<vmem>>, vector<1x1x8x1024xbf16>
    %34 = vector.shape_cast %33 : vector<1x1x8x1024xbf16> to vector<8x1024xbf16>
    %c88 = arith.constant 88 : index
    %c0_48 = arith.constant 0 : index
    %35 = vector.load %arg7[%c88, %c0_48] : memref<216x1024xbf16, #tpu.memory_space<vmem>>, vector<8x1024xbf16>
    tpu.vector_store %arg7[%c88, %c0_48], %34 {strides = array<i32>} : memref<216x1024xbf16, #tpu.memory_space<vmem>>, vector<8x1024xbf16>,
    %c0_49 = arith.constant 0 : index
    %c0_50 = arith.constant 0 : index
    %c0_51 = arith.constant 0 : index
    %c110 = arith.constant 110 : index
    %36 = vector.load %arg2[%c0_49, %c0_50, %c0_51, %c110] : memref<1x1x8x1246xbf16, #tpu.memory_space<vmem>>, vector<1x1x8x1024xbf16>
    %37 = vector.shape_cast %36 : vector<1x1x8x1024xbf16> to vector<8x1024xbf16>
    %c96 = arith.constant 96 : index
    %c0_52 = arith.constant 0 : index
    %38 = vector.load %arg7[%c96, %c0_52] : memref<216x1024xbf16, #tpu.memory_space<vmem>>, vector<8x1024xbf16>
    tpu.vector_store %arg7[%c96, %c0_52], %37 {strides = array<i32>} : memref<216x1024xbf16, #tpu.memory_space<vmem>>, vector<8x1024xbf16>,
    %c0_53 = arith.constant 0 : index
    %c0_54 = arith.constant 0 : index
    %c0_55 = arith.constant 0 : index
    %c111 = arith.constant 111 : index
    %39 = vector.load %arg2[%c0_53, %c0_54, %c0_55, %c111] : memref<1x1x8x1246xbf16, #tpu.memory_space<vmem>>, vector<1x1x8x1024xbf16>
    %40 = vector.shape_cast %39 : vector<1x1x8x1024xbf16> to vector<8x1024xbf16>
    %c104 = arith.constant 104 : index
    %c0_56 = arith.constant 0 : index
    %41 = vector.load %arg7[%c104, %c0_56] : memref<216x1024xbf16, #tpu.memory_space<vmem>>, vector<8x1024xbf16>
    tpu.vector_store %arg7[%c104, %c0_56], %40 {strides = array<i32>} : memref<216x1024xbf16, #tpu.memory_space<vmem>>, vector<8x1024xbf16>,
    %c0_57 = arith.constant 0 : index
    %c0_58 = arith.constant 0 : index
    %c0_59 = arith.constant 0 : index
    %c112 = arith.constant 112 : index
    %42 = vector.load %arg2[%c0_57, %c0_58, %c0_59, %c112] : memref<1x1x8x1246xbf16, #tpu.memory_space<vmem>>, vector<1x1x8x1024xbf16>
    %43 = vector.shape_cast %42 : vector<1x1x8x1024xbf16> to vector<8x1024xbf16>
    %c112_60 = arith.constant 112 : index
    %c0_61 = arith.constant 0 : index
    %44 = vector.load %arg7[%c112_60, %c0_61] : memref<216x1024xbf16, #tpu.memory_space<vmem>>, vector<8x1024xbf16>
    tpu.vector_store %arg7[%c112_60, %c0_61], %43 {strides = array<i32>} : memref<216x1024xbf16, #tpu.memory_space<vmem>>, vector<8x1024xbf16>,
    %c0_62 = arith.constant 0 : index
    %c0_63 = arith.constant 0 : index
    %c0_64 = arith.constant 0 : index
    %c120 = arith.constant 120 : index
    %45 = vector.load %arg2[%c0_62, %c0_63, %c0_64, %c120] : memref<1x1x8x1246xbf16, #tpu.memory_space<vmem>>, vector<1x1x8x1024xbf16>
    %46 = vector.shape_cast %45 : vector<1x1x8x1024xbf16> to vector<8x1024xbf16>
    %c120_65 = arith.constant 120 : index
    %c0_66 = arith.constant 0 : index
    %47 = vector.load %arg7[%c120_65, %c0_66] : memref<216x1024xbf16, #tpu.memory_space<vmem>>, vector<8x1024xbf16>
    tpu.vector_store %arg7[%c120_65, %c0_66], %46 {strides = array<i32>} : memref<216x1024xbf16, #tpu.memory_space<vmem>>, vector<8x1024xbf16>,
    %c0_67 = arith.constant 0 : index
    %c0_68 = arith.constant 0 : index
    %c0_69 = arith.constant 0 : index
    %c121 = arith.constant 121 : index
    %48 = vector.load %arg2[%c0_67, %c0_68, %c0_69, %c121] : memref<1x1x8x1246xbf16, #tpu.memory_space<vmem>>, vector<1x1x8x1024xbf16>
    %49 = vector.shape_cast %48 : vector<1x1x8x1024xbf16> to vector<8x1024xbf16>
    %c128 = arith.constant 128 : index
    %c0_70 = arith.constant 0 : index
    %50 = vector.load %arg7[%c128, %c0_70] : memref<216x1024xbf16, #tpu.memory_space<vmem>>, vector<8x1024xbf16>
    tpu.vector_store %arg7[%c128, %c0_70], %49 {strides = array<i32>} : memref<216x1024xbf16, #tpu.memory_space<vmem>>, vector<8x1024xbf16>,
    %c0_71 = arith.constant 0 : index
    %c0_72 = arith.constant 0 : index
    %c0_73 = arith.constant 0 : index
    %c122 = arith.constant 122 : index
    %51 = vector.load %arg2[%c0_71, %c0_72, %c0_73, %c122] : memref<1x1x8x1246xbf16, #tpu.memory_space<vmem>>, vector<1x1x8x1024xbf16>
    %52 = vector.shape_cast %51 : vector<1x1x8x1024xbf16> to vector<8x1024xbf16>
    %c136 = arith.constant 136 : index
    %c0_74 = arith.constant 0 : index
    %53 = vector.load %arg7[%c136, %c0_74] : memref<216x1024xbf16, #tpu.memory_space<vmem>>, vector<8x1024xbf16>
    tpu.vector_store %arg7[%c136, %c0_74], %52 {strides = array<i32>} : memref<216x1024xbf16, #tpu.memory_space<vmem>>, vector<8x1024xbf16>,
    %c0_75 = arith.constant 0 : index
    %c0_76 = arith.constant 0 : index
    %c0_77 = arith.constant 0 : index
    %c200 = arith.constant 200 : index
    %54 = vector.load %arg2[%c0_75, %c0_76, %c0_77, %c200] : memref<1x1x8x1246xbf16, #tpu.memory_space<vmem>>, vector<1x1x8x1024xbf16>
    %55 = vector.shape_cast %54 : vector<1x1x8x1024xbf16> to vector<8x1024xbf16>
    %c144 = arith.constant 144 : index
    %c0_78 = arith.constant 0 : index
    %56 = vector.load %arg7[%c144, %c0_78] : memref<216x1024xbf16, #tpu.memory_space<vmem>>, vector<8x1024xbf16>
    tpu.vector_store %arg7[%c144, %c0_78], %55 {strides = array<i32>} : memref<216x1024xbf16, #tpu.memory_space<vmem>>, vector<8x1024xbf16>,
    %c0_79 = arith.constant 0 : index
    %c0_80 = arith.constant 0 : index
    %c0_81 = arith.constant 0 : index
    %c201 = arith.constant 201 : index
    %57 = vector.load %arg2[%c0_79, %c0_80, %c0_81, %c201] : memref<1x1x8x1246xbf16, #tpu.memory_space<vmem>>, vector<1x1x8x1024xbf16>
    %58 = vector.shape_cast %57 : vector<1x1x8x1024xbf16> to vector<8x1024xbf16>
    %c152 = arith.constant 152 : index
    %c0_82 = arith.constant 0 : index
    %59 = vector.load %arg7[%c152, %c0_82] : memref<216x1024xbf16, #tpu.memory_space<vmem>>, vector<8x1024xbf16>
    tpu.vector_store %arg7[%c152, %c0_82], %58 {strides = array<i32>} : memref<216x1024xbf16, #tpu.memory_space<vmem>>, vector<8x1024xbf16>,
    %c0_83 = arith.constant 0 : index
    %c0_84 = arith.constant 0 : index
    %c0_85 = arith.constant 0 : index
    %c202 = arith.constant 202 : index
    %60 = vector.load %arg2[%c0_83, %c0_84, %c0_85, %c202] : memref<1x1x8x1246xbf16, #tpu.memory_space<vmem>>, vector<1x1x8x1024xbf16>
    %61 = vector.shape_cast %60 : vector<1x1x8x1024xbf16> to vector<8x1024xbf16>
    %c160 = arith.constant 160 : index
    %c0_86 = arith.constant 0 : index
    %62 = vector.load %arg7[%c160, %c0_86] : memref<216x1024xbf16, #tpu.memory_space<vmem>>, vector<8x1024xbf16>
    tpu.vector_store %arg7[%c160, %c0_86], %61 {strides = array<i32>} : memref<216x1024xbf16, #tpu.memory_space<vmem>>, vector<8x1024xbf16>,
    %c0_87 = arith.constant 0 : index
    %c0_88 = arith.constant 0 : index
    %c0_89 = arith.constant 0 : index
    %c210 = arith.constant 210 : index
    %63 = vector.load %arg2[%c0_87, %c0_88, %c0_89, %c210] : memref<1x1x8x1246xbf16, #tpu.memory_space<vmem>>, vector<1x1x8x1024xbf16>
    %64 = vector.shape_cast %63 : vector<1x1x8x1024xbf16> to vector<8x1024xbf16>
    %c168 = arith.constant 168 : index
    %c0_90 = arith.constant 0 : index
    %65 = vector.load %arg7[%c168, %c0_90] : memref<216x1024xbf16, #tpu.memory_space<vmem>>, vector<8x1024xbf16>
    tpu.vector_store %arg7[%c168, %c0_90], %64 {strides = array<i32>} : memref<216x1024xbf16, #tpu.memory_space<vmem>>, vector<8x1024xbf16>,
    %c0_91 = arith.constant 0 : index
    %c0_92 = arith.constant 0 : index
    %c0_93 = arith.constant 0 : index
    %c211 = arith.constant 211 : index
    %66 = vector.load %arg2[%c0_91, %c0_92, %c0_93, %c211] : memref<1x1x8x1246xbf16, #tpu.memory_space<vmem>>, vector<1x1x8x1024xbf16>
    %67 = vector.shape_cast %66 : vector<1x1x8x1024xbf16> to vector<8x1024xbf16>
    %c176 = arith.constant 176 : index
    %c0_94 = arith.constant 0 : index
    %68 = vector.load %arg7[%c176, %c0_94] : memref<216x1024xbf16, #tpu.memory_space<vmem>>, vector<8x1024xbf16>
    tpu.vector_store %arg7[%c176, %c0_94], %67 {strides = array<i32>} : memref<216x1024xbf16, #tpu.memory_space<vmem>>, vector<8x1024xbf16>,
    %c0_95 = arith.constant 0 : index
    %c0_96 = arith.constant 0 : index
    %c0_97 = arith.constant 0 : index
    %c212 = arith.constant 212 : index
    %69 = vector.load %arg2[%c0_95, %c0_96, %c0_97, %c212] : memref<1x1x8x1246xbf16, #tpu.memory_space<vmem>>, vector<1x1x8x1024xbf16>
    %70 = vector.shape_cast %69 : vector<1x1x8x1024xbf16> to vector<8x1024xbf16>
    %c184 = arith.constant 184 : index
    %c0_98 = arith.constant 0 : index
    %71 = vector.load %arg7[%c184, %c0_98] : memref<216x1024xbf16, #tpu.memory_space<vmem>>, vector<8x1024xbf16>
    tpu.vector_store %arg7[%c184, %c0_98], %70 {strides = array<i32>} : memref<216x1024xbf16, #tpu.memory_space<vmem>>, vector<8x1024xbf16>,
    %c0_99 = arith.constant 0 : index
    %c0_100 = arith.constant 0 : index
    %c0_101 = arith.constant 0 : index
    %c220 = arith.constant 220 : index
    %72 = vector.load %arg2[%c0_99, %c0_100, %c0_101, %c220] : memref<1x1x8x1246xbf16, #tpu.memory_space<vmem>>, vector<1x1x8x1024xbf16>
    %73 = vector.shape_cast %72 : vector<1x1x8x1024xbf16> to vector<8x1024xbf16>
    %c192 = arith.constant 192 : index
    %c0_102 = arith.constant 0 : index
    %74 = vector.load %arg7[%c192, %c0_102] : memref<216x1024xbf16, #tpu.memory_space<vmem>>, vector<8x1024xbf16>
    tpu.vector_store %arg7[%c192, %c0_102], %73 {strides = array<i32>} : memref<216x1024xbf16, #tpu.memory_space<vmem>>, vector<8x1024xbf16>,
    %c0_103 = arith.constant 0 : index
    %c0_104 = arith.constant 0 : index
    %c0_105 = arith.constant 0 : index
    %c221 = arith.constant 221 : index
    %75 = vector.load %arg2[%c0_103, %c0_104, %c0_105, %c221] : memref<1x1x8x1246xbf16, #tpu.memory_space<vmem>>, vector<1x1x8x1024xbf16>
    %76 = vector.shape_cast %75 : vector<1x1x8x1024xbf16> to vector<8x1024xbf16>
    %c200_106 = arith.constant 200 : index
    %c0_107 = arith.constant 0 : index
    %77 = vector.load %arg7[%c200_106, %c0_107] : memref<216x1024xbf16, #tpu.memory_space<vmem>>, vector<8x1024xbf16>
    tpu.vector_store %arg7[%c200_106, %c0_107], %76 {strides = array<i32>} : memref<216x1024xbf16, #tpu.memory_space<vmem>>, vector<8x1024xbf16>,
    %c0_108 = arith.constant 0 : index
    %c0_109 = arith.constant 0 : index
    %c0_110 = arith.constant 0 : index
    %c222 = arith.constant 222 : index
    %78 = vector.load %arg2[%c0_108, %c0_109, %c0_110, %c222] : memref<1x1x8x1246xbf16, #tpu.memory_space<vmem>>, vector<1x1x8x1024xbf16>
    %79 = vector.shape_cast %78 : vector<1x1x8x1024xbf16> to vector<8x1024xbf16>
    %c208 = arith.constant 208 : index
    %c0_111 = arith.constant 0 : index
    %80 = vector.load %arg7[%c208, %c0_111] : memref<216x1024xbf16, #tpu.memory_space<vmem>>, vector<8x1024xbf16>
    tpu.vector_store %arg7[%c208, %c0_111], %79 {strides = array<i32>} : memref<216x1024xbf16, #tpu.memory_space<vmem>>, vector<8x1024xbf16>,
    %c0_112 = arith.constant 0 : index
    %c0_113 = arith.constant 0 : index
    %81 = vector.load %arg3[%c0_112, %c0_113] : memref<8x216xbf16, #tpu.memory_space<vmem>>, vector<8x216xbf16>
    %c0_114 = arith.constant 0 : index
    %c0_115 = arith.constant 0 : index
    %82 = vector.load %arg7[%c0_114, %c0_115] : memref<216x1024xbf16, #tpu.memory_space<vmem>>, vector<216x1024xbf16>
    %cst = arith.constant dense<0.000000e+00> : vector<8x1024xf32>
    %83 = tpu.matmul %81, %82, %cst {dimension_numbers = #tpu.dot_dimension_numbers<[1], [0], [0], [1], [0, 0, 1, 1], [], []>} : vector<8x216xbf16>, vector<216x1024xbf16>, vector<8x1024xf32> -> vector<8x1024xf32>
    %c0_116 = arith.constant 0 : index
    %c0_117 = arith.constant 0 : index
    %84 = vector.load %arg4[%c0_116, %c0_117] : memref<8x1xf32, #tpu.memory_space<vmem>>, vector<8x1xf32>
    %85 = vector.broadcast %84 : vector<8x1xf32> to vector<8x1024xf32>
    %86 = arith.addf %83, %85 : vector<8x1024xf32>
    %cst_118 = arith.constant 0.000000e+00 : f32
    %87 = vector.broadcast %cst_118 : f32 to vector<8x1024xf32>
    %88 = arith.cmpf ogt, %86, %87 : vector<8x1024xf32>
    %c0_119 = arith.constant 0 : index
    %c0_120 = arith.constant 0 : index
    %89 = vector.load %arg5[%c0_119, %c0_120] : memref<8x1xf32, #tpu.memory_space<vmem>>, vector<8x1xf32>
    %90 = vector.broadcast %89 : vector<8x1xf32> to vector<8x1024xf32>
    %91 = arith.mulf %86, %90 : vector<8x1024xf32>
    %92 = arith.select %88, %86, %91 : vector<8x1024xi1>, vector<8x1024xf32>
    %c0_121 = arith.constant 0 : index
    %c0_122 = arith.constant 0 : index
    %c0_123 = arith.constant 0 : index
    %93 = vector.load %arg6[%c0_121, %c0_122, %c0_123] : memref<1x8x1024xf32, #tpu.memory_space<vmem>>, vector<1x8x1024xf32>
    %94 = vector.shape_cast %93 : vector<1x8x1024xf32> to vector<8x1024xf32>
    %95 = vector.shape_cast %92 : vector<8x1024xf32> to vector<1x8x1024xf32>
    tpu.vector_store %arg6[%c0_121, %c0_122, %c0_123], %95 {strides = array<i32>} : memref<1x8x1024xf32, #tpu.memory_space<vmem>>, vector<1x8x1024xf32>,
    return
  }
  func.func @transform_0(%arg0: i32, %arg1: i32) -> (i32, i32, i32, i32) {
    %c0_i32 = arith.constant 0 : i32
    %c0_i32_0 = arith.constant 0 : i32
    %c0_i32_1 = arith.constant 0 : i32
    return %arg0, %arg1, %c0_i32, %c0_i32_0 : i32, i32, i32, i32
  }
  func.func @transform_1(%arg0: i32, %arg1: i32) -> (i32, i32) {
    %c0_i32 = arith.constant 0 : i32
    %c0_i32_0 = arith.constant 0 : i32
    %c0_i32_1 = arith.constant 0 : i32
    return %c0_i32, %c0_i32_0 : i32, i32
  }
  func.func @transform_2(%arg0: i32, %arg1: i32) -> (i32, i32) {
    %c0_i32 = arith.constant 0 : i32
    %c0_i32_0 = arith.constant 0 : i32
    %c0_i32_1 = arith.constant 0 : i32
    return %c0_i32, %c0_i32_0 : i32, i32
  }
  func.func @transform_3(%arg0: i32, %arg1: i32) -> (i32, i32) {
    %c0_i32 = arith.constant 0 : i32
    %c0_i32_0 = arith.constant 0 : i32
    %c0_i32_1 = arith.constant 0 : i32
    return %c0_i32, %c0_i32_0 : i32, i32
  }
  func.func @transform_4(%arg0: i32, %arg1: i32) -> (i32, i32, i32) {
    %c0_i32 = arith.constant 0 : i32
    %c0_i32_0 = arith.constant 0 : i32
    return %arg0, %c0_i32, %arg1 : i32, i32, i32
  }
}

</mosaic_0001>

<llo_original>
// kernel: tpu_custom_call.1
$region0: #{tpu_custom_call.1}
  #allocation0 [shape = 'u32[]', space=smem, size = 0x4, offset = 0x4, fixed_abs, tag = 'smem constant byte address 0x4 - core index']
  #allocation1 [shape = 'u32[144,128]{1,0:T(1,128)}', space=vmem, size = 0x12000, scoped, tag = 'internal scratch']
  #allocation2 [shape = 'bf16[216,1024]{1,0:T(8,128)(2,1)}', space=vmem, size = 0x6c000, scoped, tag = 'scratch operand']
  %s0 = inlined_call_operand.hbm [shape: bf16[2,1,8,1246], index: 0, kind: input, shape index: {}]
  %s1 = inlined_call_operand.vmem [shape: bf16[8,216], index: 1, kind: input, shape index: {}]
  %s2 = inlined_call_operand.vmem [shape: f32[8,1], index: 2, kind: input, shape index: {}]
  %s3 = inlined_call_operand.vmem [shape: f32[8,1], index: 3, kind: input, shape index: {}]
  %s4 = inlined_call_operand.hbm [shape: f32[2,8,1024], index: 4, kind: output, shape index: {}]
  %s5 = sld [smem:[#allocation0]]
  $region53: #{tpu_custom_call.1} parent=0
    _
  %s7 = ssub.s32 1, %s5
  %s8 = scalar_select 0, %s7, %s5
  $region1: #{tpu_custom_call.1} parent=0
    #allocation3 [shape = 'u8[40960]{0}', space=vmem, size = 0xa000, scoped, tag = 'input window, operand 0']
    #allocation4 [shape = 's32[2]{0}', space=sflag, size = 0x8, scoped, tag = 'scoped memory for tpu_custom_call.1']
    #allocation5 [shape = 's32[2]{0}', space=sflag, size = 0x8, scoped, tag = 'scoped memory for tpu_custom_call.1']
    #allocation6 [shape = 'u8[65536]{0}', space=vmem, size = 0x10000, scoped, tag = 'output window, operand 0']
    %9 = vsyncpa [#allocation4], 0
    %s10 = scalar_lea.sflag [#allocation4], 1
    %11 = vsyncpa %s10, 0
    %12 = vsyncpa [#allocation5], 0
    %s13 = scalar_lea.sflag [#allocation5], 1
    %14 = vsyncpa %s13, 0
    loop: start=0, step=1, limit=4
    $region2: #{tpu_custom_call.1} parent=1 // loop_pre_header
      _
    $region3: #{tpu_custom_call.1} parent=1 // loop_header
      %s16 = sphi 0, %s20
      %p17 = scmp.ge.s32.totalorder %s16, 4
      %s23 = sphi 0, %s35
      %s24 = sphi 0, %s31
      %s25 = sphi 0, %s23
      %s26 = sphi 0, %s24
      %s27 = sphi 0, %s25
      %s28 = sphi 0, %s26
      %s40 = sphi 0, %s42
      %s43 = sphi 0, %s40
      %s44 = sphi 0, %s43
      %s60 = sphi 0, %s44
      %s64 = sphi 0, %s64
      %s66 = sphi 0, %s64
      %s67 = sphi 0, %s66
      %s81 = sphi 0, %s67
      %s85 = sphi 0, %s85
      %s87 = sphi 0, %s85
      %s88 = sphi 0, %s87
      %s102 = sphi 0, %s88
      %s106 = sphi 0, %s106
      %s108 = sphi 0, %s106
      %s109 = sphi 0, %s108
      %s123 = sphi 0, %s109
      %s131 = sphi 0, %s133
      %s134 = sphi 0, %s131
      %s135 = sphi 0, %s134
      %s151 = sphi 0, %s135
    $region4: #{tpu_custom_call.1} parent=1 // loop_header_branch
      %19 = sbr.rel (%p17) target = $region8
    $region5: #{tpu_custom_call.1} parent=1 // loop_body
      %s21 = ssub.s32 %s16, 1
      %s22 = ssub.s32 %s16, 2
      %s29 = sadd.s32 1, %s24
      %p30 = scmp.ge.s32.totalorder %s29, 1
      %s31 = scalar_select %p30, 0, %s29
      %s32 = sadd.s32 1, %s23
      %s33 = scalar_select %p30, %s32, %s23
      %p34 = scmp.ge.s32.totalorder %s33, 2
      %s35 = scalar_select %p34, 0, %s33
      %s36 = ssub.s32 %s23, %s35
      %s37 = ssub.s32 %s24, %s31
      %s38 = sor.u32 %s36, %s37
      %p39 = scmp.eq.s32.totalorder %s38, 0
      %s41 = sadd.s32 %s40, 1
      %s42 = scalar_select %p39, %s40, %s41
      %p45 = pneg %p39
      %p46 = scmp.eq.s32.totalorder %s16, 1
      %p47 = por %p45, %p46
      %p48 = scmp.ne.s32.totalorder %s40, %s43
      %p49 = scmp.eq.s32.totalorder %s16, 0
      %p50 = por %p48, %p49
      %p51 = scmp.ne.s32.totalorder %s40, %s43
      %p52 = scmp.eq.s32.totalorder %s21, 1
      %p53 = por %p51, %p52
      %p54 = scmp.ne.s32.totalorder %s43, %s44
      %p55 = scmp.eq.s32.totalorder %s21, 0
      %p56 = por %p54, %p55
      %p57 = scmp.ne.s32.totalorder %s43, %s44
      %p58 = scmp.eq.s32.totalorder %s22, 1
      %p59 = por %p57, %p58
      %p61 = scmp.ne.s32.totalorder %s44, %s60
      %p62 = scmp.eq.s32.totalorder %s22, 0
      %p63 = por %p61, %p62
      %s65 = sadd.s32 %s64, 1
      %p68 = scmp.eq.s32.totalorder %s16, 1
      %p69 = scmp.ne.s32.totalorder %s64, %s66
      %p70 = scmp.eq.s32.totalorder %s16, 0
      %p71 = por %p69, %p70
      %p72 = scmp.ne.s32.totalorder %s64, %s66
      %p73 = scmp.eq.s32.totalorder %s21, 1
      %p74 = por %p72, %p73
      %p75 = scmp.ne.s32.totalorder %s66, %s67
      %p76 = scmp.eq.s32.totalorder %s21, 0
      %p77 = por %p75, %p76
      %p78 = scmp.ne.s32.totalorder %s66, %s67
      %p79 = scmp.eq.s32.totalorder %s22, 1
      %p80 = por %p78, %p79
      %p82 = scmp.ne.s32.totalorder %s67, %s81
      %p83 = scmp.eq.s32.totalorder %s22, 0
      %p84 = por %p82, %p83
      %s86 = sadd.s32 %s85, 1
      %p89 = scmp.eq.s32.totalorder %s16, 1
      %p90 = scmp.ne.s32.totalorder %s85, %s87
      %p91 = scmp.eq.s32.totalorder %s16, 0
      %p92 = por %p90, %p91
      %p93 = scmp.ne.s32.totalorder %s85, %s87
      %p94 = scmp.eq.s32.totalorder %s21, 1
      %p95 = por %p93, %p94
      %p96 = scmp.ne.s32.totalorder %s87, %s88
      %p97 = scmp.eq.s32.totalorder %s21, 0
      %p98 = por %p96, %p97
      %p99 = scmp.ne.s32.totalorder %s87, %s88
      %p100 = scmp.eq.s32.totalorder %s22, 1
      %p101 = por %p99, %p100
      %p103 = scmp.ne.s32.totalorder %s88, %s102
      %p104 = scmp.eq.s32.totalorder %s22, 0
      %p105 = por %p103, %p104
      %s107 = sadd.s32 %s106, 1
      %p110 = scmp.eq.s32.totalorder %s16, 1
      %p111 = scmp.ne.s32.totalorder %s106, %s108
      %p112 = scmp.eq.s32.totalorder %s16, 0
      %p113 = por %p111, %p112
      %p114 = scmp.ne.s32.totalorder %s106, %s108
      %p115 = scmp.eq.s32.totalorder %s21, 1
      %p116 = por %p114, %p115
      %p117 = scmp.ne.s32.totalorder %s108, %s109
      %p118 = scmp.eq.s32.totalorder %s21, 0
      %p119 = por %p117, %p118
      %p120 = scmp.ne.s32.totalorder %s108, %s109
      %p121 = scmp.eq.s32.totalorder %s22, 1
      %p122 = por %p120, %p121
      %p124 = scmp.ne.s32.totalorder %s109, %s123
      %p125 = scmp.eq.s32.totalorder %s22, 0
      %p126 = por %p124, %p125
      %s127 = ssub.s32 %s23, %s35
      %s128 = ssub.s32 %s24, %s31
      %s129 = sor.u32 %s127, %s128
      %p130 = scmp.eq.s32.totalorder %s129, 0
      %s132 = sadd.s32 %s131, 1
      %s133 = scalar_select %p130, %s131, %s132
      %p136 = pneg %p130
      %p137 = scmp.eq.s32.totalorder %s16, 1
      %p138 = por %p136, %p137
      %p139 = scmp.ne.s32.totalorder %s131, %s134
      %p140 = scmp.eq.s32.totalorder %s16, 0
      %p141 = por %p139, %p140
      %p142 = scmp.ne.s32.totalorder %s131, %s134
      %p143 = scmp.eq.s32.totalorder %s21, 1
      %p144 = por %p142, %p143
      %p145 = scmp.ne.s32.totalorder %s134, %s135
      %p146 = scmp.eq.s32.totalorder %s21, 0
      %p147 = por %p145, %p146
      %p148 = scmp.ne.s32.totalorder %s134, %s135
      %p149 = scmp.eq.s32.totalorder %s22, 1
      %p150 = por %p148, %p149
      %p152 = scmp.ne.s32.totalorder %s135, %s151
      %p153 = scmp.eq.s32.totalorder %s22, 0
      %p154 = por %p152, %p153
      %p155 = scmp.le.s32.totalorder 1, %s16
      %p156 = scmp.lt.s32.totalorder %s16, 3
      %p157 = pnand %p155, %p156
      %p158 = pneg %p157
      // Predicated region
      $region9: #{tpu_custom_call.1} parent=5 // pred_check
        _
      $region10: #{tpu_custom_call.1} parent=5 // pred_check_branch
        %160 = sbr.rel (%p157) target = $region12
      $region11: #{tpu_custom_call.1} parent=5 // pred_region
        %s161 = ssub.s32 %s16, 1
        // Predicated region
        $region13: #{tpu_custom_call.1} parent=11 // pred_check
          %p162 = pneg %p77
        $region14: #{tpu_custom_call.1} parent=11 // pred_check_branch
          %164 = sbr.rel (%p162) target = $region16
        $region15: #{tpu_custom_call.1} parent=11 // pred_region
          _
        $region16: #{tpu_custom_call.1} parent=11 // pred_fallthru
          _
        // Predicated region
        $region17: #{tpu_custom_call.1} parent=11 // pred_check
          %p165 = pneg %p98
        $region18: #{tpu_custom_call.1} parent=11 // pred_check_branch
          %167 = sbr.rel (%p165) target = $region20
        $region19: #{tpu_custom_call.1} parent=11 // pred_region
          _
        $region20: #{tpu_custom_call.1} parent=11 // pred_fallthru
          _
        // Predicated region
        $region21: #{tpu_custom_call.1} parent=11 // pred_check
          %p168 = pneg %p119
        $region22: #{tpu_custom_call.1} parent=11 // pred_check_branch
          %170 = sbr.rel (%p168) target = $region24
        $region23: #{tpu_custom_call.1} parent=11 // pred_region
          _
        $region24: #{tpu_custom_call.1} parent=11 // pred_fallthru
          _
      $region12: #{tpu_custom_call.1} parent=5 // pred_fallthru
        _
      %p171 = scmp.lt.s32.totalorder %s16, 2
      // Predicated region
      $region25: #{tpu_custom_call.1} parent=5 // pred_check
        %p172 = pneg %p171
      $region26: #{tpu_custom_call.1} parent=5 // pred_check_branch
        %174 = sbr.rel (%p172) target = $region28
      $region27: #{tpu_custom_call.1} parent=5 // pred_region
        // Predicated region
        $region29: #{tpu_custom_call.1} parent=27 // pred_check
          %p175 = pneg %p50
        $region30: #{tpu_custom_call.1} parent=27 // pred_check_branch
          %177 = sbr.rel (%p175) target = $region32
        $region31: #{tpu_custom_call.1} parent=27 // pred_region
          %s178 = sand.u32 %s40, 1
          %s179 = scalar_lea.sflag [#allocation4], %s178
          %s180 = sand.u32 %s40, 1
          %s181 = smul.addr %s180, 40
          %s182 = scalar_lea.vmem [#allocation3], %s181
          %s184 = ssub.s32 640, 640
          %185 = vsyncadd %s179, %s184
          %s186 = smul.addr %s24, 10
          %s187 = smul.addr %s23, 10
          %s188 = sadd.s32 %s186, %s187
          %s189 = smul.addr %s188, 64
          %s190 = scalar_lea.hbm %s0, %s189
          %s192 = sshll.u32 %s182, 4
          %s193 = int_to_ptr.vmem [resolvable:$true] %s192
          %195 = dma.hbm_to_vmem [thread:$0]  %s190, 640, %s193, %s179
        $region32: #{tpu_custom_call.1} parent=27 // pred_fallthru
          _
      $region28: #{tpu_custom_call.1} parent=5 // pred_fallthru
        _
      %p196 = scmp.le.s32.totalorder 1, %s16
      %p197 = scmp.lt.s32.totalorder %s16, 3
      %p198 = pnand %p196, %p197
      %p199 = pneg %p198
      // Predicated region
      $region33: #{tpu_custom_call.1} parent=5 // pred_check
        _
      $region34: #{tpu_custom_call.1} parent=5 // pred_check_branch
        %201 = sbr.rel (%p198) target = $region36
      $region35: #{tpu_custom_call.1} parent=5 // pred_region
        %s202 = ssub.s32 %s16, 1
        %s203 = sand.u32 %s43, 1
        %s204 = scalar_lea.sflag [#allocation4], %s203
        %s205 = sand.u32 %s43, 1
        %s206 = smul.addr %s205, 40
        %s207 = scalar_lea.vmem [#allocation3], %s206
        // Predicated region
        $region37: #{tpu_custom_call.1} parent=35 // pred_check
          %p208 = pneg %p56
        $region38: #{tpu_custom_call.1} parent=35 // pred_check_branch
          %210 = sbr.rel (%p208) target = $region40
        $region39: #{tpu_custom_call.1} parent=35 // pred_region
          %211 = dma.done %s204, 640
        $region40: #{tpu_custom_call.1} parent=35 // pred_fallthru
          _
        %s212 = sand.u32 %s43, 1
        %s213 = scalar_lea.sflag [#allocation4], %s212
        %s214 = sand.u32 %s43, 1
        %s215 = smul.addr %s214, 40
        %s216 = scalar_lea.vmem [#allocation3], %s215
        %p217 = pneg %p56
        %p218 = pneg %p53
        %p219 = pneg %p77
        %p220 = pneg %p74
        %p221 = pneg %p98
        %p222 = pneg %p95
        %p223 = pneg %p119
        %p224 = pneg %p116
        %p225 = pneg %p147
        %p226 = pneg %p144
        %s227 = sand.u32 %s134, 1
        %s228 = scalar_lea.sflag [#allocation5], %s227
        %s229 = sand.u32 %s134, 1
        %s230 = smul.addr %s229, 64
        %s231 = scalar_lea.vmem [#allocation6], %s230
        %s232 = smul.u32 8, %s26
        %v234 = vld [vmem:[%s207] sm:$0xff]
        %v235 = vld [vmem:[%s207 + $0x8] sm:$0xff]
        %v236 = vld [vmem:[%s207 + $0x10] sm:$0xff]
        %v237 = vld [vmem:[%s207 + $0x18] sm:$0xff]
        %238 = vst [vmem:[#allocation2] sm:$0xff] %v234
        %239 = vst [vmem:[#allocation2 + $0x8] sm:$0xff] %v235
        %240 = vst [vmem:[#allocation2 + $0x10] sm:$0xff] %v236
        %241 = vst [vmem:[#allocation2 + $0x18] sm:$0xff] %v237
        %v242 = vld [vmem:[%s207] sm:$0xff]
        %v243 = vld [vmem:[%s207 + $0x8] sm:$0xff]
        %v244 = vld [vmem:[%s207 + $0x10] sm:$0xff]
        %v245 = vld [vmem:[%s207 + $0x18] sm:$0xff]
        %v246 = vld [vmem:[%s207 + $0x20] sm:$0xf]
        %252 = vrot.lane.b32.xlu0 %v242, 127
        %v253 = vpop.permute.xlu0 %252
        %254 = vrot.lane.b32.xlu0 %v243, 127
        %v255 = vpop.permute.xlu0 %254
        %256 = vrot.lane.b32.xlu0 %v244, 127
        %v257 = vpop.permute.xlu0 %256
        %258 = vrot.lane.b32.xlu0 %v245, 127
        %v259 = vpop.permute.xlu0 %258
        %260 = vrot.lane.b32.xlu0 %v246, 127
        %v261 = vpop.permute.xlu0 %260
        %v262 = vrot.slane %v253, 4
        %v263 = vrot.slane %v255, 4
        %v264 = vrot.slane %v257, 4
        %v265 = vrot.slane %v259, 4
        %v266 = vrot.slane %v261, 4
        %vm267 = vcmask 1043456
        %v268 = vsel %vm267, %v262, %v263
        %vm269 = vcmask 1039360
        %v270 = vsel %vm269, %v253, %v268
        %v271 = vsel %vm267, %v263, %v264
        %v272 = vsel %vm269, %v255, %v271
        %v273 = vsel %vm267, %v264, %v265
        %v274 = vsel %vm269, %v257, %v273
        %v275 = vsel %vm267, %v265, %v266
        %v276 = vsel %vm269, %v259, %v275
        %281 = vst [vmem:[#allocation2 + $0x20] sm:$0xff] %v270
        %282 = vst [vmem:[#allocation2 + $0x28] sm:$0xff] %v272
        %283 = vst [vmem:[#allocation2 + $0x30] sm:$0xff] %v274
        %284 = vst [vmem:[#allocation2 + $0x38] sm:$0xff] %v276
        %v285 = vld [vmem:[%s207] sm:$0xff]
        %v286 = vld [vmem:[%s207 + $0x8] sm:$0xff]
        %v287 = vld [vmem:[%s207 + $0x10] sm:$0xff]
        %v288 = vld [vmem:[%s207 + $0x18] sm:$0xff]
        %v289 = vld [vmem:[%s207 + $0x20] sm:$0xf]
        %295 = vrot.lane.b32.xlu0 %v285, 126
        %v296 = vpop.permute.xlu0 %295
        %297 = vrot.lane.b32.xlu0 %v286, 126
        %v298 = vpop.permute.xlu0 %297
        %299 = vrot.lane.b32.xlu0 %v287, 126
        %v300 = vpop.permute.xlu0 %299
        %301 = vrot.lane.b32.xlu0 %v288, 126
        %v302 = vpop.permute.xlu0 %301
        %303 = vrot.lane.b32.xlu0 %v289, 126
        %v304 = vpop.permute.xlu0 %303
        %v305 = vrot.slane %v296, 4
        %v306 = vrot.slane %v298, 4
        %v307 = vrot.slane %v300, 4
        %v308 = vrot.slane %v302, 4
        %v309 = vrot.slane %v304, 4
        %v310 = vsel %vm267, %v305, %v306
        %vm311 = vcmask 1031168
        %v312 = vsel %vm311, %v296, %v310
        %v313 = vsel %vm267, %v306, %v307
        %v314 = vsel %vm311, %v298, %v313
        %v315 = vsel %vm267, %v307, %v308
        %v316 = vsel %vm311, %v300, %v315
        %v317 = vsel %vm267, %v308, %v309
        %v318 = vsel %vm311, %v302, %v317
        %323 = vst [vmem:[#allocation2 + $0x40] sm:$0xff] %v312
        %324 = vst [vmem:[#allocation2 + $0x48] sm:$0xff] %v314
        %325 = vst [vmem:[#allocation2 + $0x50] sm:$0xff] %v316
        %326 = vst [vmem:[#allocation2 + $0x58] sm:$0xff] %v318
        %v327 = vld [vmem:[%s207] sm:$0xff]
        %v328 = vld [vmem:[%s207 + $0x8] sm:$0xff]
        %v329 = vld [vmem:[%s207 + $0x10] sm:$0xff]
        %v330 = vld [vmem:[%s207 + $0x18] sm:$0xff]
        %v331 = vld [vmem:[%s207 + $0x20] sm:$0xf]
        %337 = vrot.lane.b32.xlu0 %v327, 118
        %v338 = vpop.permute.xlu0 %337
        %339 = vrot.lane.b32.xlu0 %v328, 118
        %v340 = vpop.permute.xlu0 %339
        %341 = vrot.lane.b32.xlu0 %v329, 118
        %v342 = vpop.permute.xlu0 %341
        %343 = vrot.lane.b32.xlu0 %v330, 118
        %v344 = vpop.permute.xlu0 %343
        %345 = vrot.lane.b32.xlu0 %v331, 118
        %v346 = vpop.permute.xlu0 %345
        %v347 = vrot.slane %v338, 4
        %v348 = vrot.slane %v340, 4
        %v349 = vrot.slane %v342, 4
        %v350 = vrot.slane %v344, 4
        %v351 = vrot.slane %v346, 4
        %v352 = vsel %vm267, %v347, %v348
        %vm353 = vcmask 965632
        %v354 = vsel %vm353, %v338, %v352
        %v355 = vsel %vm267, %v348, %v349
        %v356 = vsel %vm353, %v340, %v355
        %v357 = vsel %vm267, %v349, %v350
        %v358 = vsel %vm353, %v342, %v357
        %v359 = vsel %vm267, %v350, %v351
        %v360 = vsel %vm353, %v344, %v359
        %365 = vst [vmem:[#allocation2 + $0x60] sm:$0xff] %v354
        %366 = vst [vmem:[#allocation2 + $0x68] sm:$0xff] %v356
        %367 = vst [vmem:[#allocation2 + $0x70] sm:$0xff] %v358
        %368 = vst [vmem:[#allocation2 + $0x78] sm:$0xff] %v360
        %v369 = vld [vmem:[%s207] sm:$0xff]
        %v370 = vld [vmem:[%s207 + $0x8] sm:$0xff]
        %v371 = vld [vmem:[%s207 + $0x10] sm:$0xff]
        %v372 = vld [vmem:[%s207 + $0x18] sm:$0xff]
        %v373 = vld [vmem:[%s207 + $0x20] sm:$0xf]
        %379 = vrot.lane.b32.xlu0 %v369, 117
        %v380 = vpop.permute.xlu0 %379
        %381 = vrot.lane.b32.xlu0 %v370, 117
        %v382 = vpop.permute.xlu0 %381
        %383 = vrot.lane.b32.xlu0 %v371, 117
        %v384 = vpop.permute.xlu0 %383
        %385 = vrot.lane.b32.xlu0 %v372, 117
        %v386 = vpop.permute.xlu0 %385
        %387 = vrot.lane.b32.xlu0 %v373, 117
        %v388 = vpop.permute.xlu0 %387
        %v389 = vrot.slane %v380, 4
        %v390 = vrot.slane %v382, 4
        %v391 = vrot.slane %v384, 4
        %v392 = vrot.slane %v386, 4
        %v393 = vrot.slane %v388, 4
        %v394 = vsel %vm267, %v389, %v390
        %vm395 = vcmask 957440
        %v396 = vsel %vm395, %v380, %v394
        %v397 = vsel %vm267, %v390, %v391
        %v398 = vsel %vm395, %v382, %v397
        %v399 = vsel %vm267, %v391, %v392
        %v400 = vsel %vm395, %v384, %v399
        %v401 = vsel %vm267, %v392, %v393
        %v402 = vsel %vm395, %v386, %v401
        %407 = vst [vmem:[#allocation2 + $0x80] sm:$0xff] %v396
        %408 = vst [vmem:[#allocation2 + $0x88] sm:$0xff] %v398
        %409 = vst [vmem:[#allocation2 + $0x90] sm:$0xff] %v400
        %410 = vst [vmem:[#allocation2 + $0x98] sm:$0xff] %v402
        %v411 = vld [vmem:[%s207] sm:$0xff]
        %v412 = vld [vmem:[%s207 + $0x8] sm:$0xff]
        %v413 = vld [vmem:[%s207 + $0x10] sm:$0xff]
        %v414 = vld [vmem:[%s207 + $0x18] sm:$0xff]
        %v415 = vld [vmem:[%s207 + $0x20] sm:$0xf]
        %421 = vrot.lane.b32.xlu0 %v411, 116
        %v422 = vpop.permute.xlu0 %421
        %423 = vrot.lane.b32.xlu0 %v412, 116
        %v424 = vpop.permute.xlu0 %423
        %425 = vrot.lane.b32.xlu0 %v413, 116
        %v426 = vpop.permute.xlu0 %425
        %427 = vrot.lane.b32.xlu0 %v414, 116
        %v428 = vpop.permute.xlu0 %427
        %429 = vrot.lane.b32.xlu0 %v415, 116
        %v430 = vpop.permute.xlu0 %429
        %v431 = vrot.slane %v422, 4
        %v432 = vrot.slane %v424, 4
        %v433 = vrot.slane %v426, 4
        %v434 = vrot.slane %v428, 4
        %v435 = vrot.slane %v430, 4
        %v436 = vsel %vm267, %v431, %v432
        %vm437 = vcmask 949248
        %v438 = vsel %vm437, %v422, %v436
        %v439 = vsel %vm267, %v432, %v433
        %v440 = vsel %vm437, %v424, %v439
        %v441 = vsel %vm267, %v433, %v434
        %v442 = vsel %vm437, %v426, %v441
        %v443 = vsel %vm267, %v434, %v435
        %v444 = vsel %vm437, %v428, %v443
        %449 = vst [vmem:[#allocation2 + $0xa0] sm:$0xff] %v438
        %450 = vst [vmem:[#allocation2 + $0xa8] sm:$0xff] %v440
        %451 = vst [vmem:[#allocation2 + $0xb0] sm:$0xff] %v442
        %452 = vst [vmem:[#allocation2 + $0xb8] sm:$0xff] %v444
        %v453 = vld [vmem:[%s207] sm:$0xff]
        %v454 = vld [vmem:[%s207 + $0x8] sm:$0xff]
        %v455 = vld [vmem:[%s207 + $0x10] sm:$0xff]
        %v456 = vld [vmem:[%s207 + $0x18] sm:$0xff]
        %v457 = vld [vmem:[%s207 + $0x20] sm:$0xf]
        %463 = vrot.lane.b32.xlu0 %v453, 108
        %v464 = vpop.permute.xlu0 %463
        %465 = vrot.lane.b32.xlu0 %v454, 108
        %v466 = vpop.permute.xlu0 %465
        %467 = vrot.lane.b32.xlu0 %v455, 108
        %v468 = vpop.permute.xlu0 %467
        %469 = vrot.lane.b32.xlu0 %v456, 108
        %v470 = vpop.permute.xlu0 %469
        %471 = vrot.lane.b32.xlu0 %v457, 108
        %v472 = vpop.permute.xlu0 %471
        %v473 = vrot.slane %v464, 4
        %v474 = vrot.slane %v466, 4
        %v475 = vrot.slane %v468, 4
        %v476 = vrot.slane %v470, 4
        %v477 = vrot.slane %v472, 4
        %v478 = vsel %vm267, %v473, %v474
        %vm479 = vcmask 883712
        %v480 = vsel %vm479, %v464, %v478
        %v481 = vsel %vm267, %v474, %v475
        %v482 = vsel %vm479, %v466, %v481
        %v483 = vsel %vm267, %v475, %v476
        %v484 = vsel %vm479, %v468, %v483
        %v485 = vsel %vm267, %v476, %v477
        %v486 = vsel %vm479, %v470, %v485
        %491 = vst [vmem:[#allocation2 + $0xc0] sm:$0xff] %v480
        %492 = vst [vmem:[#allocation2 + $0xc8] sm:$0xff] %v482
        %493 = vst [vmem:[#allocation2 + $0xd0] sm:$0xff] %v484
        %494 = vst [vmem:[#allocation2 + $0xd8] sm:$0xff] %v486
        %v495 = vld [vmem:[%s207] sm:$0xff]
        %v496 = vld [vmem:[%s207 + $0x8] sm:$0xff]
        %v497 = vld [vmem:[%s207 + $0x10] sm:$0xff]
        %v498 = vld [vmem:[%s207 + $0x18] sm:$0xff]
        %v499 = vld [vmem:[%s207 + $0x20] sm:$0xf]
        %505 = vrot.lane.b32.xlu0 %v495, 107
        %v506 = vpop.permute.xlu0 %505
        %507 = vrot.lane.b32.xlu0 %v496, 107
        %v508 = vpop.permute.xlu0 %507
        %509 = vrot.lane.b32.xlu0 %v497, 107
        %v510 = vpop.permute.xlu0 %509
        %511 = vrot.lane.b32.xlu0 %v498, 107
        %v512 = vpop.permute.xlu0 %511
        %513 = vrot.lane.b32.xlu0 %v499, 107
        %v514 = vpop.permute.xlu0 %513
        %v515 = vrot.slane %v506, 4
        %v516 = vrot.slane %v508, 4
        %v517 = vrot.slane %v510, 4
        %v518 = vrot.slane %v512, 4
        %v519 = vrot.slane %v514, 4
        %v520 = vsel %vm267, %v515, %v516
        %vm521 = vcmask 875520
        %v522 = vsel %vm521, %v506, %v520
        %v523 = vsel %vm267, %v516, %v517
        %v524 = vsel %vm521, %v508, %v523
        %v525 = vsel %vm267, %v517, %v518
        %v526 = vsel %vm521, %v510, %v525
        %v527 = vsel %vm267, %v518, %v519
        %v528 = vsel %vm521, %v512, %v527
        %533 = vst [vmem:[#allocation2 + $0xe0] sm:$0xff] %v522
        %534 = vst [vmem:[#allocation2 + $0xe8] sm:$0xff] %v524
        %535 = vst [vmem:[#allocation2 + $0xf0] sm:$0xff] %v526
        %536 = vst [vmem:[#allocation2 + $0xf8] sm:$0xff] %v528
        %v537 = vld [vmem:[%s207] sm:$0xff]
        %v538 = vld [vmem:[%s207 + $0x8] sm:$0xff]
        %v539 = vld [vmem:[%s207 + $0x10] sm:$0xff]
        %v540 = vld [vmem:[%s207 + $0x18] sm:$0xff]
        %v541 = vld [vmem:[%s207 + $0x20] sm:$0xf]
        %547 = vrot.lane.b32.xlu0 %v537, 106
        %v548 = vpop.permute.xlu0 %547
        %549 = vrot.lane.b32.xlu0 %v538, 106
        %v550 = vpop.permute.xlu0 %549
        %551 = vrot.lane.b32.xlu0 %v539, 106
        %v552 = vpop.permute.xlu0 %551
        %553 = vrot.lane.b32.xlu0 %v540, 106
        %v554 = vpop.permute.xlu0 %553
        %555 = vrot.lane.b32.xlu0 %v541, 106
        %v556 = vpop.permute.xlu0 %555
        %v557 = vrot.slane %v548, 4
        %v558 = vrot.slane %v550, 4
        %v559 = vrot.slane %v552, 4
        %v560 = vrot.slane %v554, 4
        %v561 = vrot.slane %v556, 4
        %v562 = vsel %vm267, %v557, %v558
        %vm563 = vcmask 867328
        %v564 = vsel %vm563, %v548, %v562
        %v565 = vsel %vm267, %v558, %v559
        %v566 = vsel %vm563, %v550, %v565
        %v567 = vsel %vm267, %v559, %v560
        %v568 = vsel %vm563, %v552, %v567
        %v569 = vsel %vm267, %v560, %v561
        %v570 = vsel %vm563, %v554, %v569
        %575 = vst [vmem:[#allocation2 + $0x100] sm:$0xff] %v564
        %576 = vst [vmem:[#allocation2 + $0x108] sm:$0xff] %v566
        %577 = vst [vmem:[#allocation2 + $0x110] sm:$0xff] %v568
        %578 = vst [vmem:[#allocation2 + $0x118] sm:$0xff] %v570
        %v579 = vld [vmem:[%s207] sm:$0xff]
        %v580 = vld [vmem:[%s207 + $0x8] sm:$0xff]
        %v581 = vld [vmem:[%s207 + $0x10] sm:$0xff]
        %v582 = vld [vmem:[%s207 + $0x18] sm:$0xff]
        %v583 = vld [vmem:[%s207 + $0x20] sm:$0xf]
        %589 = vrot.lane.b32.xlu0 %v579, 28
        %v590 = vpop.permute.xlu0 %589
        %591 = vrot.lane.b32.xlu0 %v580, 28
        %v592 = vpop.permute.xlu0 %591
        %593 = vrot.lane.b32.xlu0 %v581, 28
        %v594 = vpop.permute.xlu0 %593
        %595 = vrot.lane.b32.xlu0 %v582, 28
        %v596 = vpop.permute.xlu0 %595
        %597 = vrot.lane.b32.xlu0 %v583, 28
        %v598 = vpop.permute.xlu0 %597
        %v599 = vrot.slane %v590, 4
        %v600 = vrot.slane %v592, 4
        %v601 = vrot.slane %v594, 4
        %v602 = vrot.slane %v596, 4
        %v603 = vrot.slane %v598, 4
        %v604 = vsel %vm267, %v599, %v600
        %vm605 = vcmask 228352
        %v606 = vsel %vm605, %v590, %v604
        %v607 = vsel %vm267, %v600, %v601
        %v608 = vsel %vm605, %v592, %v607
        %v609 = vsel %vm267, %v601, %v602
        %v610 = vsel %vm605, %v594, %v609
        %v611 = vsel %vm267, %v602, %v603
        %v612 = vsel %vm605, %v596, %v611
        %617 = vst [vmem:[#allocation2 + $0x120] sm:$0xff] %v606
        %618 = vst [vmem:[#allocation2 + $0x128] sm:$0xff] %v608
        %619 = vst [vmem:[#allocation2 + $0x130] sm:$0xff] %v610
        %620 = vst [vmem:[#allocation2 + $0x138] sm:$0xff] %v612
        %v621 = vld [vmem:[%s207] sm:$0xff]
        %v622 = vld [vmem:[%s207 + $0x8] sm:$0xff]
        %v623 = vld [vmem:[%s207 + $0x10] sm:$0xff]
        %v624 = vld [vmem:[%s207 + $0x18] sm:$0xff]
        %v625 = vld [vmem:[%s207 + $0x20] sm:$0xf]
        %631 = vrot.lane.b32.xlu0 %v621, 27
        %v632 = vpop.permute.xlu0 %631
        %633 = vrot.lane.b32.xlu0 %v622, 27
        %v634 = vpop.permute.xlu0 %633
        %635 = vrot.lane.b32.xlu0 %v623, 27
        %v636 = vpop.permute.xlu0 %635
        %637 = vrot.lane.b32.xlu0 %v624, 27
        %v638 = vpop.permute.xlu0 %637
        %639 = vrot.lane.b32.xlu0 %v625, 27
        %v640 = vpop.permute.xlu0 %639
        %v641 = vrot.slane %v632, 4
        %v642 = vrot.slane %v634, 4
        %v643 = vrot.slane %v636, 4
        %v644 = vrot.slane %v638, 4
        %v645 = vrot.slane %v640, 4
        %v646 = vsel %vm267, %v641, %v642
        %vm647 = vcmask 220160
        %v648 = vsel %vm647, %v632, %v646
        %v649 = vsel %vm267, %v642, %v643
        %v650 = vsel %vm647, %v634, %v649
        %v651 = vsel %vm267, %v643, %v644
        %v652 = vsel %vm647, %v636, %v651
        %v653 = vsel %vm267, %v644, %v645
        %v654 = vsel %vm647, %v638, %v653
        %659 = vst [vmem:[#allocation2 + $0x140] sm:$0xff] %v648
        %660 = vst [vmem:[#allocation2 + $0x148] sm:$0xff] %v650
        %661 = vst [vmem:[#allocation2 + $0x150] sm:$0xff] %v652
        %662 = vst [vmem:[#allocation2 + $0x158] sm:$0xff] %v654
        %v663 = vld [vmem:[%s207] sm:$0xff]
        %v664 = vld [vmem:[%s207 + $0x8] sm:$0xff]
        %v665 = vld [vmem:[%s207 + $0x10] sm:$0xff]
        %v666 = vld [vmem:[%s207 + $0x18] sm:$0xff]
        %v667 = vld [vmem:[%s207 + $0x20] sm:$0xf]
        %673 = vrot.lane.b32.xlu0 %v663, 26
        %v674 = vpop.permute.xlu0 %673
        %675 = vrot.lane.b32.xlu0 %v664, 26
        %v676 = vpop.permute.xlu0 %675
        %677 = vrot.lane.b32.xlu0 %v665, 26
        %v678 = vpop.permute.xlu0 %677
        %679 = vrot.lane.b32.xlu0 %v666, 26
        %v680 = vpop.permute.xlu0 %679
        %681 = vrot.lane.b32.xlu0 %v667, 26
        %v682 = vpop.permute.xlu0 %681
        %v683 = vrot.slane %v674, 4
        %v684 = vrot.slane %v676, 4
        %v685 = vrot.slane %v678, 4
        %v686 = vrot.slane %v680, 4
        %v687 = vrot.slane %v682, 4
        %v688 = vsel %vm267, %v683, %v684
        %vm689 = vcmask 211968
        %v690 = vsel %vm689, %v674, %v688
        %v691 = vsel %vm267, %v684, %v685
        %v692 = vsel %vm689, %v676, %v691
        %v693 = vsel %vm267, %v685, %v686
        %v694 = vsel %vm689, %v678, %v693
        %v695 = vsel %vm267, %v686, %v687
        %v696 = vsel %vm689, %v680, %v695
        %701 = vst [vmem:[#allocation2 + $0x160] sm:$0xff] %v690
        %702 = vst [vmem:[#allocation2 + $0x168] sm:$0xff] %v692
        %703 = vst [vmem:[#allocation2 + $0x170] sm:$0xff] %v694
        %704 = vst [vmem:[#allocation2 + $0x178] sm:$0xff] %v696
        %v705 = vld [vmem:[%s207] sm:$0xff]
        %v706 = vld [vmem:[%s207 + $0x8] sm:$0xff]
        %v707 = vld [vmem:[%s207 + $0x10] sm:$0xff]
        %v708 = vld [vmem:[%s207 + $0x18] sm:$0xff]
        %v709 = vld [vmem:[%s207 + $0x20] sm:$0xf]
        %715 = vrot.lane.b32.xlu0 %v705, 18
        %v716 = vpop.permute.xlu0 %715
        %717 = vrot.lane.b32.xlu0 %v706, 18
        %v718 = vpop.permute.xlu0 %717
        %719 = vrot.lane.b32.xlu0 %v707, 18
        %v720 = vpop.permute.xlu0 %719
        %721 = vrot.lane.b32.xlu0 %v708, 18
        %v722 = vpop.permute.xlu0 %721
        %723 = vrot.lane.b32.xlu0 %v709, 18
        %v724 = vpop.permute.xlu0 %723
        %v725 = vrot.slane %v716, 4
        %v726 = vrot.slane %v718, 4
        %v727 = vrot.slane %v720, 4
        %v728 = vrot.slane %v722, 4
        %v729 = vrot.slane %v724, 4
        %v730 = vsel %vm267, %v725, %v726
        %vm731 = vcmask 146432
        %v732 = vsel %vm731, %v716, %v730
        %v733 = vsel %vm267, %v726, %v727
        %v734 = vsel %vm731, %v718, %v733
        %v735 = vsel %vm267, %v727, %v728
        %v736 = vsel %vm731, %v720, %v735
        %v737 = vsel %vm267, %v728, %v729
        %v738 = vsel %vm731, %v722, %v737
        %743 = vst [vmem:[#allocation2 + $0x180] sm:$0xff] %v732
        %744 = vst [vmem:[#allocation2 + $0x188] sm:$0xff] %v734
        %745 = vst [vmem:[#allocation2 + $0x190] sm:$0xff] %v736
        %746 = vst [vmem:[#allocation2 + $0x198] sm:$0xff] %v738
        %v747 = vld [vmem:[%s207] sm:$0xff]
        %v748 = vld [vmem:[%s207 + $0x8] sm:$0xff]
        %v749 = vld [vmem:[%s207 + $0x10] sm:$0xff]
        %v750 = vld [vmem:[%s207 + $0x18] sm:$0xff]
        %v751 = vld [vmem:[%s207 + $0x20] sm:$0xf]
        %757 = vrot.lane.b32.xlu0 %v747, 17
        %v758 = vpop.permute.xlu0 %757
        %759 = vrot.lane.b32.xlu0 %v748, 17
        %v760 = vpop.permute.xlu0 %759
        %761 = vrot.lane.b32.xlu0 %v749, 17
        %v762 = vpop.permute.xlu0 %761
        %763 = vrot.lane.b32.xlu0 %v750, 17
        %v764 = vpop.permute.xlu0 %763
        %765 = vrot.lane.b32.xlu0 %v751, 17
        %v766 = vpop.permute.xlu0 %765
        %v767 = vrot.slane %v758, 4
        %v768 = vrot.slane %v760, 4
        %v769 = vrot.slane %v762, 4
        %v770 = vrot.slane %v764, 4
        %v771 = vrot.slane %v766, 4
        %v772 = vsel %vm267, %v767, %v768
        %vm773 = vcmask 138240
        %v774 = vsel %vm773, %v758, %v772
        %v775 = vsel %vm267, %v768, %v769
        %v776 = vsel %vm773, %v760, %v775
        %v777 = vsel %vm267, %v769, %v770
        %v778 = vsel %vm773, %v762, %v777
        %v779 = vsel %vm267, %v770, %v771
        %v780 = vsel %vm773, %v764, %v779
        %785 = vst [vmem:[#allocation2 + $0x1a0] sm:$0xff] %v774
        %786 = vst [vmem:[#allocation2 + $0x1a8] sm:$0xff] %v776
        %787 = vst [vmem:[#allocation2 + $0x1b0] sm:$0xff] %v778
        %788 = vst [vmem:[#allocation2 + $0x1b8] sm:$0xff] %v780
        %v789 = vld [vmem:[%s207] sm:$0xff]
        %v790 = vld [vmem:[%s207 + $0x8] sm:$0xff]
        %v791 = vld [vmem:[%s207 + $0x10] sm:$0xff]
        %v792 = vld [vmem:[%s207 + $0x18] sm:$0xff]
        %v793 = vld [vmem:[%s207 + $0x20] sm:$0xf]
        %799 = vrot.lane.b32.xlu0 %v789, 16
        %v800 = vpop.permute.xlu0 %799
        %801 = vrot.lane.b32.xlu0 %v790, 16
        %v802 = vpop.permute.xlu0 %801
        %803 = vrot.lane.b32.xlu0 %v791, 16
        %v804 = vpop.permute.xlu0 %803
        %805 = vrot.lane.b32.xlu0 %v792, 16
        %v806 = vpop.permute.xlu0 %805
        %807 = vrot.lane.b32.xlu0 %v793, 16
        %v808 = vpop.permute.xlu0 %807
        %v809 = vrot.slane %v800, 4
        %v810 = vrot.slane %v802, 4
        %v811 = vrot.slane %v804, 4
        %v812 = vrot.slane %v806, 4
        %v813 = vrot.slane %v808, 4
        %v814 = vsel %vm267, %v809, %v810
        %vm815 = vcmask 130048
        %v816 = vsel %vm815, %v800, %v814
        %v817 = vsel %vm267, %v810, %v811
        %v818 = vsel %vm815, %v802, %v817
        %v819 = vsel %vm267, %v811, %v812
        %v820 = vsel %vm815, %v804, %v819
        %v821 = vsel %vm267, %v812, %v813
        %v822 = vsel %vm815, %v806, %v821
        %827 = vst [vmem:[#allocation2 + $0x1c0] sm:$0xff] %v816
        %828 = vst [vmem:[#allocation2 + $0x1c8] sm:$0xff] %v818
        %829 = vst [vmem:[#allocation2 + $0x1d0] sm:$0xff] %v820
        %830 = vst [vmem:[#allocation2 + $0x1d8] sm:$0xff] %v822
        %v831 = vld [vmem:[%s207] sm:$0xff]
        %v832 = vld [vmem:[%s207 + $0x8] sm:$0xff]
        %v833 = vld [vmem:[%s207 + $0x10] sm:$0xff]
        %v834 = vld [vmem:[%s207 + $0x18] sm:$0xff]
        %v835 = vld [vmem:[%s207 + $0x20] sm:$0xf]
        %841 = vrot.lane.b32.xlu0 %v831, 8
        %v842 = vpop.permute.xlu0 %841
        %843 = vrot.lane.b32.xlu0 %v832, 8
        %v844 = vpop.permute.xlu0 %843
        %845 = vrot.lane.b32.xlu0 %v833, 8
        %v846 = vpop.permute.xlu0 %845
        %847 = vrot.lane.b32.xlu0 %v834, 8
        %v848 = vpop.permute.xlu0 %847
        %849 = vrot.lane.b32.xlu0 %v835, 8
        %v850 = vpop.permute.xlu0 %849
        %v851 = vrot.slane %v842, 4
        %v852 = vrot.slane %v844, 4
        %v853 = vrot.slane %v846, 4
        %v854 = vrot.slane %v848, 4
        %v855 = vrot.slane %v850, 4
        %v856 = vsel %vm267, %v851, %v852
        %vm857 = vcmask 64512
        %v858 = vsel %vm857, %v842, %v856
        %v859 = vsel %vm267, %v852, %v853
        %v860 = vsel %vm857, %v844, %v859
        %v861 = vsel %vm267, %v853, %v854
        %v862 = vsel %vm857, %v846, %v861
        %v863 = vsel %vm267, %v854, %v855
        %v864 = vsel %vm857, %v848, %v863
        %869 = vst [vmem:[#allocation2 + $0x1e0] sm:$0xff] %v858
        %870 = vst [vmem:[#allocation2 + $0x1e8] sm:$0xff] %v860
        %871 = vst [vmem:[#allocation2 + $0x1f0] sm:$0xff] %v862
        %872 = vst [vmem:[#allocation2 + $0x1f8] sm:$0xff] %v864
        %v873 = vld [vmem:[%s207] sm:$0xff]
        %v874 = vld [vmem:[%s207 + $0x8] sm:$0xff]
        %v875 = vld [vmem:[%s207 + $0x10] sm:$0xff]
        %v876 = vld [vmem:[%s207 + $0x18] sm:$0xff]
        %v877 = vld [vmem:[%s207 + $0x20] sm:$0xf]
        %883 = vrot.lane.b32.xlu0 %v873, 7
        %v884 = vpop.permute.xlu0 %883
        %885 = vrot.lane.b32.xlu0 %v874, 7
        %v886 = vpop.permute.xlu0 %885
        %887 = vrot.lane.b32.xlu0 %v875, 7
        %v888 = vpop.permute.xlu0 %887
        %889 = vrot.lane.b32.xlu0 %v876, 7
        %v890 = vpop.permute.xlu0 %889
        %891 = vrot.lane.b32.xlu0 %v877, 7
        %v892 = vpop.permute.xlu0 %891
        %v893 = vrot.slane %v884, 4
        %v894 = vrot.slane %v886, 4
        %v895 = vrot.slane %v888, 4
        %v896 = vrot.slane %v890, 4
        %v897 = vrot.slane %v892, 4
        %v898 = vsel %vm267, %v893, %v894
        %vm899 = vcmask 56320
        %v900 = vsel %vm899, %v884, %v898
        %v901 = vsel %vm267, %v894, %v895
        %v902 = vsel %vm899, %v886, %v901
        %v903 = vsel %vm267, %v895, %v896
        %v904 = vsel %vm899, %v888, %v903
        %v905 = vsel %vm267, %v896, %v897
        %v906 = vsel %vm899, %v890, %v905
        %911 = vst [vmem:[#allocation2 + $0x200] sm:$0xff] %v900
        %912 = vst [vmem:[#allocation2 + $0x208] sm:$0xff] %v902
        %913 = vst [vmem:[#allocation2 + $0x210] sm:$0xff] %v904
        %914 = vst [vmem:[#allocation2 + $0x218] sm:$0xff] %v906
        %v915 = vld [vmem:[%s207] sm:$0xff]
        %v916 = vld [vmem:[%s207 + $0x8] sm:$0xff]
        %v917 = vld [vmem:[%s207 + $0x10] sm:$0xff]
        %v918 = vld [vmem:[%s207 + $0x18] sm:$0xff]
        %v919 = vld [vmem:[%s207 + $0x20] sm:$0xf]
        %925 = vrot.lane.b32.xlu0 %v915, 6
        %v926 = vpop.permute.xlu0 %925
        %927 = vrot.lane.b32.xlu0 %v916, 6
        %v928 = vpop.permute.xlu0 %927
        %929 = vrot.lane.b32.xlu0 %v917, 6
        %v930 = vpop.permute.xlu0 %929
        %931 = vrot.lane.b32.xlu0 %v918, 6
        %v932 = vpop.permute.xlu0 %931
        %933 = vrot.lane.b32.xlu0 %v919, 6
        %v934 = vpop.permute.xlu0 %933
        %v935 = vrot.slane %v926, 4
        %v936 = vrot.slane %v928, 4
        %v937 = vrot.slane %v930, 4
        %v938 = vrot.slane %v932, 4
        %v939 = vrot.slane %v934, 4
        %v940 = vsel %vm267, %v935, %v936
        %vm941 = vcmask 48128
        %v942 = vsel %vm941, %v926, %v940
        %v943 = vsel %vm267, %v936, %v937
        %v944 = vsel %vm941, %v928, %v943
        %v945 = vsel %vm267, %v937, %v938
        %v946 = vsel %vm941, %v930, %v945
        %v947 = vsel %vm267, %v938, %v939
        %v948 = vsel %vm941, %v932, %v947
        %953 = vst [vmem:[#allocation2 + $0x220] sm:$0xff] %v942
        %954 = vst [vmem:[#allocation2 + $0x228] sm:$0xff] %v944
        %955 = vst [vmem:[#allocation2 + $0x230] sm:$0xff] %v946
        %956 = vst [vmem:[#allocation2 + $0x238] sm:$0xff] %v948
        %v957 = vld [vmem:[%s207 + $0x4] sm:$0xff]
        %v958 = vld [vmem:[%s207 + $0xc] sm:$0xff]
        %v959 = vld [vmem:[%s207 + $0x14] sm:$0xff]
        %v960 = vld [vmem:[%s207 + $0x1c] sm:$0xff]
        %v961 = vld [vmem:[%s207 + $0x24] sm:$0xf]
        %967 = vrot.lane.b32.xlu0 %v957, 56
        %v968 = vpop.permute.xlu0 %967
        %969 = vrot.lane.b32.xlu0 %v958, 56
        %v970 = vpop.permute.xlu0 %969
        %971 = vrot.lane.b32.xlu0 %v959, 56
        %v972 = vpop.permute.xlu0 %971
        %973 = vrot.lane.b32.xlu0 %v960, 56
        %v974 = vpop.permute.xlu0 %973
        %975 = vrot.lane.b32.xlu0 %v961, 56
        %v976 = vpop.permute.xlu0 %975
        %v977 = vrot.slane %v968, 4
        %v978 = vrot.slane %v970, 4
        %v979 = vrot.slane %v972, 4
        %v980 = vrot.slane %v974, 4
        %v981 = vrot.slane %v976, 4
        %v982 = vsel %vm267, %v977, %v978
        %vm983 = vcmask 457728
        %v984 = vsel %vm983, %v968, %v982
        %v985 = vsel %vm267, %v978, %v979
        %v986 = vsel %vm983, %v970, %v985
        %v987 = vsel %vm267, %v979, %v980
        %v988 = vsel %vm983, %v972, %v987
        %v989 = vsel %vm267, %v980, %v981
        %v990 = vsel %vm983, %v974, %v989
        %995 = vst [vmem:[#allocation2 + $0x240] sm:$0xff] %v984
        %996 = vst [vmem:[#allocation2 + $0x248] sm:$0xff] %v986
        %997 = vst [vmem:[#allocation2 + $0x250] sm:$0xff] %v988
        %998 = vst [vmem:[#allocation2 + $0x258] sm:$0xff] %v990
        %v999 = vld [vmem:[%s207 + $0x4] sm:$0xff]
        %v1000 = vld [vmem:[%s207 + $0xc] sm:$0xff]
        %v1001 = vld [vmem:[%s207 + $0x14] sm:$0xff]
        %v1002 = vld [vmem:[%s207 + $0x1c] sm:$0xff]
        %v1003 = vld [vmem:[%s207 + $0x24] sm:$0xf]
        %1009 = vrot.lane.b32.xlu0 %v999, 55
        %v1010 = vpop.permute.xlu0 %1009
        %1011 = vrot.lane.b32.xlu0 %v1000, 55
        %v1012 = vpop.permute.xlu0 %1011
        %1013 = vrot.lane.b32.xlu0 %v1001, 55
        %v1014 = vpop.permute.xlu0 %1013
        %1015 = vrot.lane.b32.xlu0 %v1002, 55
        %v1016 = vpop.permute.xlu0 %1015
        %1017 = vrot.lane.b32.xlu0 %v1003, 55
        %v1018 = vpop.permute.xlu0 %1017
        %v1019 = vrot.slane %v1010, 4
        %v1020 = vrot.slane %v1012, 4
        %v1021 = vrot.slane %v1014, 4
        %v1022 = vrot.slane %v1016, 4
        %v1023 = vrot.slane %v1018, 4
        %v1024 = vsel %vm267, %v1019, %v1020
        %vm1025 = vcmask 449536
        %v1026 = vsel %vm1025, %v1010, %v1024
        %v1027 = vsel %vm267, %v1020, %v1021
        %v1028 = vsel %vm1025, %v1012, %v1027
        %v1029 = vsel %vm267, %v1021, %v1022
        %v1030 = vsel %vm1025, %v1014, %v1029
        %v1031 = vsel %vm267, %v1022, %v1023
        %v1032 = vsel %vm1025, %v1016, %v1031
        %1037 = vst [vmem:[#allocation2 + $0x260] sm:$0xff] %v1026
        %1038 = vst [vmem:[#allocation2 + $0x268] sm:$0xff] %v1028
        %1039 = vst [vmem:[#allocation2 + $0x270] sm:$0xff] %v1030
        %1040 = vst [vmem:[#allocation2 + $0x278] sm:$0xff] %v1032
        %v1041 = vld [vmem:[%s207 + $0x4] sm:$0xff]
        %v1042 = vld [vmem:[%s207 + $0xc] sm:$0xff]
        %v1043 = vld [vmem:[%s207 + $0x14] sm:$0xff]
        %v1044 = vld [vmem:[%s207 + $0x1c] sm:$0xff]
        %v1045 = vld [vmem:[%s207 + $0x24] sm:$0xf]
        %1051 = vrot.lane.b32.xlu0 %v1041, 54
        %v1052 = vpop.permute.xlu0 %1051
        %1053 = vrot.lane.b32.xlu0 %v1042, 54
        %v1054 = vpop.permute.xlu0 %1053
        %1055 = vrot.lane.b32.xlu0 %v1043, 54
        %v1056 = vpop.permute.xlu0 %1055
        %1057 = vrot.lane.b32.xlu0 %v1044, 54
        %v1058 = vpop.permute.xlu0 %1057
        %1059 = vrot.lane.b32.xlu0 %v1045, 54
        %v1060 = vpop.permute.xlu0 %1059
        %v1061 = vrot.slane %v1052, 4
        %v1062 = vrot.slane %v1054, 4
        %v1063 = vrot.slane %v1056, 4
        %v1064 = vrot.slane %v1058, 4
        %v1065 = vrot.slane %v1060, 4
        %v1066 = vsel %vm267, %v1061, %v1062
        %vm1067 = vcmask 441344
        %v1068 = vsel %vm1067, %v1052, %v1066
        %v1069 = vsel %vm267, %v1062, %v1063
        %v1070 = vsel %vm1067, %v1054, %v1069
        %v1071 = vsel %vm267, %v1063, %v1064
        %v1072 = vsel %vm1067, %v1056, %v1071
        %v1073 = vsel %vm267, %v1064, %v1065
        %v1074 = vsel %vm1067, %v1058, %v1073
        %1079 = vst [vmem:[#allocation2 + $0x280] sm:$0xff] %v1068
        %1080 = vst [vmem:[#allocation2 + $0x288] sm:$0xff] %v1070
        %1081 = vst [vmem:[#allocation2 + $0x290] sm:$0xff] %v1072
        %1082 = vst [vmem:[#allocation2 + $0x298] sm:$0xff] %v1074
        %v1083 = vld [vmem:[%s207 + $0x4] sm:$0xff]
        %v1084 = vld [vmem:[%s207 + $0xc] sm:$0xff]
        %v1085 = vld [vmem:[%s207 + $0x14] sm:$0xff]
        %v1086 = vld [vmem:[%s207 + $0x1c] sm:$0xff]
        %v1087 = vld [vmem:[%s207 + $0x24] sm:$0xf]
        %1093 = vrot.lane.b32.xlu0 %v1083, 46
        %v1094 = vpop.permute.xlu0 %1093
        %1095 = vrot.lane.b32.xlu0 %v1084, 46
        %v1096 = vpop.permute.xlu0 %1095
        %1097 = vrot.lane.b32.xlu0 %v1085, 46
        %v1098 = vpop.permute.xlu0 %1097
        %1099 = vrot.lane.b32.xlu0 %v1086, 46
        %v1100 = vpop.permute.xlu0 %1099
        %1101 = vrot.lane.b32.xlu0 %v1087, 46
        %v1102 = vpop.permute.xlu0 %1101
        %v1103 = vrot.slane %v1094, 4
        %v1104 = vrot.slane %v1096, 4
        %v1105 = vrot.slane %v1098, 4
        %v1106 = vrot.slane %v1100, 4
        %v1107 = vrot.slane %v1102, 4
        %v1108 = vsel %vm267, %v1103, %v1104
        %vm1109 = vcmask 375808
        %v1110 = vsel %vm1109, %v1094, %v1108
        %v1111 = vsel %vm267, %v1104, %v1105
        %v1112 = vsel %vm1109, %v1096, %v1111
        %v1113 = vsel %vm267, %v1105, %v1106
        %v1114 = vsel %vm1109, %v1098, %v1113
        %v1115 = vsel %vm267, %v1106, %v1107
        %v1116 = vsel %vm1109, %v1100, %v1115
        %1121 = vst [vmem:[#allocation2 + $0x2a0] sm:$0xff] %v1110
        %1122 = vst [vmem:[#allocation2 + $0x2a8] sm:$0xff] %v1112
        %1123 = vst [vmem:[#allocation2 + $0x2b0] sm:$0xff] %v1114
        %1124 = vst [vmem:[#allocation2 + $0x2b8] sm:$0xff] %v1116
        %v1125 = vld [vmem:[%s207 + $0x4] sm:$0xff]
        %v1126 = vld [vmem:[%s207 + $0xc] sm:$0xff]
        %v1127 = vld [vmem:[%s207 + $0x14] sm:$0xff]
        %v1128 = vld [vmem:[%s207 + $0x1c] sm:$0xff]
        %v1129 = vld [vmem:[%s207 + $0x24] sm:$0xf]
        %1135 = vrot.lane.b32.xlu0 %v1125, 45
        %v1136 = vpop.permute.xlu0 %1135
        %1137 = vrot.lane.b32.xlu0 %v1126, 45
        %v1138 = vpop.permute.xlu0 %1137
        %1139 = vrot.lane.b32.xlu0 %v1127, 45
        %v1140 = vpop.permute.xlu0 %1139
        %1141 = vrot.lane.b32.xlu0 %v1128, 45
        %v1142 = vpop.permute.xlu0 %1141
        %1143 = vrot.lane.b32.xlu0 %v1129, 45
        %v1144 = vpop.permute.xlu0 %1143
        %v1145 = vrot.slane %v1136, 4
        %v1146 = vrot.slane %v1138, 4
        %v1147 = vrot.slane %v1140, 4
        %v1148 = vrot.slane %v1142, 4
        %v1149 = vrot.slane %v1144, 4
        %v1150 = vsel %vm267, %v1145, %v1146
        %vm1151 = vcmask 367616
        %v1152 = vsel %vm1151, %v1136, %v1150
        %v1153 = vsel %vm267, %v1146, %v1147
        %v1154 = vsel %vm1151, %v1138, %v1153
        %v1155 = vsel %vm267, %v1147, %v1148
        %v1156 = vsel %vm1151, %v1140, %v1155
        %v1157 = vsel %vm267, %v1148, %v1149
        %v1158 = vsel %vm1151, %v1142, %v1157
        %1163 = vst [vmem:[#allocation2 + $0x2c0] sm:$0xff] %v1152
        %1164 = vst [vmem:[#allocation2 + $0x2c8] sm:$0xff] %v1154
        %1165 = vst [vmem:[#allocation2 + $0x2d0] sm:$0xff] %v1156
        %1166 = vst [vmem:[#allocation2 + $0x2d8] sm:$0xff] %v1158
        %v1167 = vld [vmem:[%s207 + $0x4] sm:$0xff]
        %v1168 = vld [vmem:[%s207 + $0xc] sm:$0xff]
        %v1169 = vld [vmem:[%s207 + $0x14] sm:$0xff]
        %v1170 = vld [vmem:[%s207 + $0x1c] sm:$0xff]
        %v1171 = vld [vmem:[%s207 + $0x24] sm:$0xf]
        %1177 = vrot.lane.b32.xlu0 %v1167, 44
        %v1178 = vpop.permute.xlu0 %1177
        %1179 = vrot.lane.b32.xlu0 %v1168, 44
        %v1180 = vpop.permute.xlu0 %1179
        %1181 = vrot.lane.b32.xlu0 %v1169, 44
        %v1182 = vpop.permute.xlu0 %1181
        %1183 = vrot.lane.b32.xlu0 %v1170, 44
        %v1184 = vpop.permute.xlu0 %1183
        %1185 = vrot.lane.b32.xlu0 %v1171, 44
        %v1186 = vpop.permute.xlu0 %1185
        %v1187 = vrot.slane %v1178, 4
        %v1188 = vrot.slane %v1180, 4
        %v1189 = vrot.slane %v1182, 4
        %v1190 = vrot.slane %v1184, 4
        %v1191 = vrot.slane %v1186, 4
        %v1192 = vsel %vm267, %v1187, %v1188
        %vm1193 = vcmask 359424
        %v1194 = vsel %vm1193, %v1178, %v1192
        %v1195 = vsel %vm267, %v1188, %v1189
        %v1196 = vsel %vm1193, %v1180, %v1195
        %v1197 = vsel %vm267, %v1189, %v1190
        %v1198 = vsel %vm1193, %v1182, %v1197
        %v1199 = vsel %vm267, %v1190, %v1191
        %v1200 = vsel %vm1193, %v1184, %v1199
        %1205 = vst [vmem:[#allocation2 + $0x2e0] sm:$0xff] %v1194
        %1206 = vst [vmem:[#allocation2 + $0x2e8] sm:$0xff] %v1196
        %1207 = vst [vmem:[#allocation2 + $0x2f0] sm:$0xff] %v1198
        %1208 = vst [vmem:[#allocation2 + $0x2f8] sm:$0xff] %v1200
        %v1209 = vld [vmem:[%s207 + $0x4] sm:$0xff]
        %v1210 = vld [vmem:[%s207 + $0xc] sm:$0xff]
        %v1211 = vld [vmem:[%s207 + $0x14] sm:$0xff]
        %v1212 = vld [vmem:[%s207 + $0x1c] sm:$0xff]
        %v1213 = vld [vmem:[%s207 + $0x24] sm:$0xf]
        %1219 = vrot.lane.b32.xlu0 %v1209, 36
        %v1220 = vpop.permute.xlu0 %1219
        %1221 = vrot.lane.b32.xlu0 %v1210, 36
        %v1222 = vpop.permute.xlu0 %1221
        %1223 = vrot.lane.b32.xlu0 %v1211, 36
        %v1224 = vpop.permute.xlu0 %1223
        %1225 = vrot.lane.b32.xlu0 %v1212, 36
        %v1226 = vpop.permute.xlu0 %1225
        %1227 = vrot.lane.b32.xlu0 %v1213, 36
        %v1228 = vpop.permute.xlu0 %1227
        %v1229 = vrot.slane %v1220, 4
        %v1230 = vrot.slane %v1222, 4
        %v1231 = vrot.slane %v1224, 4
        %v1232 = vrot.slane %v1226, 4
        %v1233 = vrot.slane %v1228, 4
        %v1234 = vsel %vm267, %v1229, %v1230
        %vm1235 = vcmask 293888
        %v1236 = vsel %vm1235, %v1220, %v1234
        %v1237 = vsel %vm267, %v1230, %v1231
        %v1238 = vsel %vm1235, %v1222, %v1237
        %v1239 = vsel %vm267, %v1231, %v1232
        %v1240 = vsel %vm1235, %v1224, %v1239
        %v1241 = vsel %vm267, %v1232, %v1233
        %v1242 = vsel %vm1235, %v1226, %v1241
        %1247 = vst [vmem:[#allocation2 + $0x300] sm:$0xff] %v1236
        %1248 = vst [vmem:[#allocation2 + $0x308] sm:$0xff] %v1238
        %1249 = vst [vmem:[#allocation2 + $0x310] sm:$0xff] %v1240
        %1250 = vst [vmem:[#allocation2 + $0x318] sm:$0xff] %v1242
        %v1251 = vld [vmem:[%s207 + $0x4] sm:$0xff]
        %v1252 = vld [vmem:[%s207 + $0xc] sm:$0xff]
        %v1253 = vld [vmem:[%s207 + $0x14] sm:$0xff]
        %v1254 = vld [vmem:[%s207 + $0x1c] sm:$0xff]
        %v1255 = vld [vmem:[%s207 + $0x24] sm:$0xf]
        %1261 = vrot.lane.b32.xlu0 %v1251, 35
        %v1262 = vpop.permute.xlu0 %1261
        %1263 = vrot.lane.b32.xlu0 %v1252, 35
        %v1264 = vpop.permute.xlu0 %1263
        %1265 = vrot.lane.b32.xlu0 %v1253, 35
        %v1266 = vpop.permute.xlu0 %1265
        %1267 = vrot.lane.b32.xlu0 %v1254, 35
        %v1268 = vpop.permute.xlu0 %1267
        %1269 = vrot.lane.b32.xlu0 %v1255, 35
        %v1270 = vpop.permute.xlu0 %1269
        %v1271 = vrot.slane %v1262, 4
        %v1272 = vrot.slane %v1264, 4
        %v1273 = vrot.slane %v1266, 4
        %v1274 = vrot.slane %v1268, 4
        %v1275 = vrot.slane %v1270, 4
        %v1276 = vsel %vm267, %v1271, %v1272
        %vm1277 = vcmask 285696
        %v1278 = vsel %vm1277, %v1262, %v1276
        %v1279 = vsel %vm267, %v1272, %v1273
        %v1280 = vsel %vm1277, %v1264, %v1279
        %v1281 = vsel %vm267, %v1273, %v1274
        %v1282 = vsel %vm1277, %v1266, %v1281
        %v1283 = vsel %vm267, %v1274, %v1275
        %v1284 = vsel %vm1277, %v1268, %v1283
        %1289 = vst [vmem:[#allocation2 + $0x320] sm:$0xff] %v1278
        %1290 = vst [vmem:[#allocation2 + $0x328] sm:$0xff] %v1280
        %1291 = vst [vmem:[#allocation2 + $0x330] sm:$0xff] %v1282
        %1292 = vst [vmem:[#allocation2 + $0x338] sm:$0xff] %v1284
        %v1293 = vld [vmem:[%s207 + $0x4] sm:$0xff]
        %v1294 = vld [vmem:[%s207 + $0xc] sm:$0xff]
        %v1295 = vld [vmem:[%s207 + $0x14] sm:$0xff]
        %v1296 = vld [vmem:[%s207 + $0x1c] sm:$0xff]
        %v1297 = vld [vmem:[%s207 + $0x24] sm:$0xf]
        %1303 = vrot.lane.b32.xlu0 %v1293, 34
        %v1304 = vpop.permute.xlu0 %1303
        %1305 = vrot.lane.b32.xlu0 %v1294, 34
        %v1306 = vpop.permute.xlu0 %1305
        %1307 = vrot.lane.b32.xlu0 %v1295, 34
        %v1308 = vpop.permute.xlu0 %1307
        %1309 = vrot.lane.b32.xlu0 %v1296, 34
        %v1310 = vpop.permute.xlu0 %1309
        %1311 = vrot.lane.b32.xlu0 %v1297, 34
        %v1312 = vpop.permute.xlu0 %1311
        %v1313 = vrot.slane %v1304, 4
        %v1314 = vrot.slane %v1306, 4
        %v1315 = vrot.slane %v1308, 4
        %v1316 = vrot.slane %v1310, 4
        %v1317 = vrot.slane %v1312, 4
        %v1318 = vsel %vm267, %v1313, %v1314
        %vm1319 = vcmask 277504
        %v1320 = vsel %vm1319, %v1304, %v1318
        %v1321 = vsel %vm267, %v1314, %v1315
        %v1322 = vsel %vm1319, %v1306, %v1321
        %v1323 = vsel %vm267, %v1315, %v1316
        %v1324 = vsel %vm1319, %v1308, %v1323
        %v1325 = vsel %vm267, %v1316, %v1317
        %v1326 = vsel %vm1319, %v1310, %v1325
        %1331 = vst [vmem:[#allocation2 + $0x340] sm:$0xff] %v1320
        %1332 = vst [vmem:[#allocation2 + $0x348] sm:$0xff] %v1322
        %1333 = vst [vmem:[#allocation2 + $0x350] sm:$0xff] %v1324
        %1334 = vst [vmem:[#allocation2 + $0x358] sm:$0xff] %v1326
        %v1335 = vld [vmem:[%s1] sm:$0xff]
        %v1336 = vld [vmem:[#allocation2] sm:$0xff]
        %v1337 = vld [vmem:[#allocation2 + $0x8] sm:$0xff]
        %v1338 = vld [vmem:[#allocation2 + $0x10] sm:$0xff]
        %v1339 = vld [vmem:[#allocation2 + $0x18] sm:$0xff]
        %v1340 = vld [vmem:[#allocation2 + $0x20] sm:$0xff]
        %v1341 = vld [vmem:[#allocation2 + $0x28] sm:$0xff]
        %v1342 = vld [vmem:[#allocation2 + $0x30] sm:$0xff]
        %v1343 = vld [vmem:[#allocation2 + $0x38] sm:$0xff]
        %v1344 = vld [vmem:[#allocation2 + $0x40] sm:$0xff]
        %v1345 = vld [vmem:[#allocation2 + $0x48] sm:$0xff]
        %v1346 = vld [vmem:[#allocation2 + $0x50] sm:$0xff]
        %v1347 = vld [vmem:[#allocation2 + $0x58] sm:$0xff]
        %v1348 = vld [vmem:[#allocation2 + $0x60] sm:$0xff]
        %v1349 = vld [vmem:[#allocation2 + $0x68] sm:$0xff]
        %v1350 = vld [vmem:[#allocation2 + $0x70] sm:$0xff]
        %v1351 = vld [vmem:[#allocation2 + $0x78] sm:$0xff]
        %v1352 = vld [vmem:[#allocation2 + $0x80] sm:$0xff]
        %v1353 = vld [vmem:[#allocation2 + $0x88] sm:$0xff]
        %v1354 = vld [vmem:[#allocation2 + $0x90] sm:$0xff]
        %v1355 = vld [vmem:[#allocation2 + $0x98] sm:$0xff]
        %v1356 = vld [vmem:[#allocation2 + $0xa0] sm:$0xff]
        %v1357 = vld [vmem:[#allocation2 + $0xa8] sm:$0xff]
        %v1358 = vld [vmem:[#allocation2 + $0xb0] sm:$0xff]
        %v1359 = vld [vmem:[#allocation2 + $0xb8] sm:$0xff]
        %v1360 = vld [vmem:[#allocation2 + $0xc0] sm:$0xff]
        %v1361 = vld [vmem:[#allocation2 + $0xc8] sm:$0xff]
        %v1362 = vld [vmem:[#allocation2 + $0xd0] sm:$0xff]
        %v1363 = vld [vmem:[#allocation2 + $0xd8] sm:$0xff]
        %v1364 = vld [vmem:[#allocation2 + $0xe0] sm:$0xff]
        %v1365 = vld [vmem:[#allocation2 + $0xe8] sm:$0xff]
        %v1366 = vld [vmem:[#allocation2 + $0xf0] sm:$0xff]
        %v1367 = vld [vmem:[#allocation2 + $0xf8] sm:$0xff]
        %v1368 = vld [vmem:[#allocation2 + $0x100] sm:$0xff]
        %v1369 = vld [vmem:[#allocation2 + $0x108] sm:$0xff]
        %v1370 = vld [vmem:[#allocation2 + $0x110] sm:$0xff]
        %v1371 = vld [vmem:[#allocation2 + $0x118] sm:$0xff]
        %v1372 = vld [vmem:[#allocation2 + $0x120] sm:$0xff]
        %v1373 = vld [vmem:[#allocation2 + $0x128] sm:$0xff]
        %v1374 = vld [vmem:[#allocation2 + $0x130] sm:$0xff]
        %v1375 = vld [vmem:[#allocation2 + $0x138] sm:$0xff]
        %v1376 = vld [vmem:[#allocation2 + $0x140] sm:$0xff]
        %v1377 = vld [vmem:[#allocation2 + $0x148] sm:$0xff]
        %v1378 = vld [vmem:[#allocation2 + $0x150] sm:$0xff]
        %v1379 = vld [vmem:[#allocation2 + $0x158] sm:$0xff]
        %v1380 = vld [vmem:[#allocation2 + $0x160] sm:$0xff]
        %v1381 = vld [vmem:[#allocation2 + $0x168] sm:$0xff]
        %v1382 = vld [vmem:[#allocation2 + $0x170] sm:$0xff]
        %v1383 = vld [vmem:[#allocation2 + $0x178] sm:$0xff]
        %v1384 = vld [vmem:[#allocation2 + $0x180] sm:$0xff]
        %v1385 = vld [vmem:[#allocation2 + $0x188] sm:$0xff]
        %v1386 = vld [vmem:[#allocation2 + $0x190] sm:$0xff]
        %v1387 = vld [vmem:[#allocation2 + $0x198] sm:$0xff]
        %v1388 = vld [vmem:[#allocation2 + $0x1a0] sm:$0xff]
        %v1389 = vld [vmem:[#allocation2 + $0x1a8] sm:$0xff]
        %v1390 = vld [vmem:[#allocation2 + $0x1b0] sm:$0xff]
        %v1391 = vld [vmem:[#allocation2 + $0x1b8] sm:$0xff]
        %v1392 = vld [vmem:[#allocation2 + $0x1c0] sm:$0xff]
        %v1393 = vld [vmem:[#allocation2 + $0x1c8] sm:$0xff]
        %v1394 = vld [vmem:[#allocation2 + $0x1d0] sm:$0xff]
        %v1395 = vld [vmem:[#allocation2 + $0x1d8] sm:$0xff]
        %v1396 = vld [vmem:[#allocation2 + $0x1e0] sm:$0xff]
        %v1397 = vld [vmem:[#allocation2 + $0x1e8] sm:$0xff]
        %v1398 = vld [vmem:[#allocation2 + $0x1f0] sm:$0xff]
        %v1399 = vld [vmem:[#allocation2 + $0x1f8] sm:$0xff]
        %v1400 = vld [vmem:[#allocation2 + $0x200] sm:$0xff]
        %v1401 = vld [vmem:[#allocation2 + $0x208] sm:$0xff]
        %v1402 = vld [vmem:[#allocation2 + $0x210] sm:$0xff]
        %v1403 = vld [vmem:[#allocation2 + $0x218] sm:$0xff]
        %v1404 = vld [vmem:[#allocation2 + $0x220] sm:$0xff]
        %v1405 = vld [vmem:[#allocation2 + $0x228] sm:$0xff]
        %v1406 = vld [vmem:[#allocation2 + $0x230] sm:$0xff]
        %v1407 = vld [vmem:[#allocation2 + $0x238] sm:$0xff]
        %v1408 = vld [vmem:[#allocation2 + $0x240] sm:$0xff]
        %v1409 = vld [vmem:[#allocation2 + $0x248] sm:$0xff]
        %v1410 = vld [vmem:[#allocation2 + $0x250] sm:$0xff]
        %v1411 = vld [vmem:[#allocation2 + $0x258] sm:$0xff]
        %v1412 = vld [vmem:[#allocation2 + $0x260] sm:$0xff]
        %v1413 = vld [vmem:[#allocation2 + $0x268] sm:$0xff]
        %v1414 = vld [vmem:[#allocation2 + $0x270] sm:$0xff]
        %v1415 = vld [vmem:[#allocation2 + $0x278] sm:$0xff]
        %v1416 = vld [vmem:[#allocation2 + $0x280] sm:$0xff]
        %v1417 = vld [vmem:[#allocation2 + $0x288] sm:$0xff]
        %v1418 = vld [vmem:[#allocation2 + $0x290] sm:$0xff]
        %v1419 = vld [vmem:[#allocation2 + $0x298] sm:$0xff]
        %v1420 = vld [vmem:[#allocation2 + $0x2a0] sm:$0xff]
        %v1421 = vld [vmem:[#allocation2 + $0x2a8] sm:$0xff]
        %v1422 = vld [vmem:[#allocation2 + $0x2b0] sm:$0xff]
        %v1423 = vld [vmem:[#allocation2 + $0x2b8] sm:$0xff]
        %v1424 = vld [vmem:[#allocation2 + $0x2c0] sm:$0xff]
        %v1425 = vld [vmem:[#allocation2 + $0x2c8] sm:$0xff]
        %v1426 = vld [vmem:[#allocation2 + $0x2d0] sm:$0xff]
        %v1427 = vld [vmem:[#allocation2 + $0x2d8] sm:$0xff]
        %v1428 = vld [vmem:[#allocation2 + $0x2e0] sm:$0xff]
        %v1429 = vld [vmem:[#allocation2 + $0x2e8] sm:$0xff]
        %v1430 = vld [vmem:[#allocation2 + $0x2f0] sm:$0xff]
        %v1431 = vld [vmem:[#allocation2 + $0x2f8] sm:$0xff]
        %v1432 = vld [vmem:[#allocation2 + $0x300] sm:$0xff]
        %v1433 = vld [vmem:[#allocation2 + $0x308] sm:$0xff]
        %v1434 = vld [vmem:[#allocation2 + $0x310] sm:$0xff]
        %v1435 = vld [vmem:[#allocation2 + $0x318] sm:$0xff]
        %v1436 = vld [vmem:[#allocation2 + $0x320] sm:$0xff]
        %v1437 = vld [vmem:[#allocation2 + $0x328] sm:$0xff]
        %v1438 = vld [vmem:[#allocation2 + $0x330] sm:$0xff]
        %v1439 = vld [vmem:[#allocation2 + $0x338] sm:$0xff]
        %v1440 = vld [vmem:[#allocation2 + $0x340] sm:$0xff]
        %v1441 = vld [vmem:[#allocation2 + $0x348] sm:$0xff]
        %v1442 = vld [vmem:[#allocation2 + $0x350] sm:$0xff]
        %v1443 = vld [vmem:[#allocation2 + $0x358] sm:$0xff]
        %v1444 = vld [vmem:[%s2] sm:$0xff]
        %1446 = vset.pattern.permute.xlu0 0
        %1447 = vperm.xlu0 %1446, %v1444
        %v1448 = vpop.permute.xlu0 %1447
        %v1451 = vunpack.c.l.b16 %v1335
        %v1452 = vunpack.c.h.b16 %v1335
        %v1453 = vpack.c.b16 %v1451, %v1451
        %v1454 = vpack.c.b16 %v1452, %v1452
        %v1564 = vunpack.c.l.b16 %v1336
        %v1565 = vunpack.c.h.b16 %v1336
        %v1566 = vunpack.c.l.b16 %v1337
        %v1567 = vunpack.c.h.b16 %v1337
        %v1568 = vunpack.c.l.b16 %v1338
        %v1569 = vunpack.c.h.b16 %v1338
        %v1570 = vunpack.c.l.b16 %v1339
        %v1571 = vunpack.c.h.b16 %v1339
        %v1572 = vunpack.c.l.b16 %v1340
        %v1573 = vunpack.c.h.b16 %v1340
        %v1574 = vunpack.c.l.b16 %v1341
        %v1575 = vunpack.c.h.b16 %v1341
        %v1576 = vunpack.c.l.b16 %v1342
        %v1577 = vunpack.c.h.b16 %v1342
        %v1578 = vunpack.c.l.b16 %v1343
        %v1579 = vunpack.c.h.b16 %v1343
        %v1580 = vunpack.c.l.b16 %v1344
        %v1581 = vunpack.c.h.b16 %v1344
        %v1582 = vunpack.c.l.b16 %v1345
        %v1583 = vunpack.c.h.b16 %v1345
        %v1584 = vunpack.c.l.b16 %v1346
        %v1585 = vunpack.c.h.b16 %v1346
        %v1586 = vunpack.c.l.b16 %v1347
        %v1587 = vunpack.c.h.b16 %v1347
        %v1588 = vunpack.c.l.b16 %v1348
        %v1589 = vunpack.c.h.b16 %v1348
        %v1590 = vunpack.c.l.b16 %v1349
        %v1591 = vunpack.c.h.b16 %v1349
        %v1592 = vunpack.c.l.b16 %v1350
        %v1593 = vunpack.c.h.b16 %v1350
        %v1594 = vunpack.c.l.b16 %v1351
        %v1595 = vunpack.c.h.b16 %v1351
        %v1596 = vunpack.c.l.b16 %v1352
        %v1597 = vunpack.c.h.b16 %v1352
        %v1598 = vunpack.c.l.b16 %v1353
        %v1599 = vunpack.c.h.b16 %v1353
        %v1600 = vunpack.c.l.b16 %v1354
        %v1601 = vunpack.c.h.b16 %v1354
        %v1602 = vunpack.c.l.b16 %v1355
        %v1603 = vunpack.c.h.b16 %v1355
        %v1604 = vunpack.c.l.b16 %v1356
        %v1605 = vunpack.c.h.b16 %v1356
        %v1606 = vunpack.c.l.b16 %v1357
        %v1607 = vunpack.c.h.b16 %v1357
        %v1608 = vunpack.c.l.b16 %v1358
        %v1609 = vunpack.c.h.b16 %v1358
        %v1610 = vunpack.c.l.b16 %v1359
        %v1611 = vunpack.c.h.b16 %v1359
        %v1612 = vunpack.c.l.b16 %v1360
        %v1613 = vunpack.c.h.b16 %v1360
        %v1614 = vunpack.c.l.b16 %v1361
        %v1615 = vunpack.c.h.b16 %v1361
        %v1616 = vunpack.c.l.b16 %v1362
        %v1617 = vunpack.c.h.b16 %v1362
        %v1618 = vunpack.c.l.b16 %v1363
        %v1619 = vunpack.c.h.b16 %v1363
        %v1620 = vunpack.c.l.b16 %v1364
        %v1621 = vunpack.c.h.b16 %v1364
        %v1622 = vunpack.c.l.b16 %v1365
        %v1623 = vunpack.c.h.b16 %v1365
        %v1624 = vunpack.c.l.b16 %v1366
        %v1625 = vunpack.c.h.b16 %v1366
        %v1626 = vunpack.c.l.b16 %v1367
        %v1627 = vunpack.c.h.b16 %v1367
        %v1628 = vunpack.c.l.b16 %v1368
        %v1629 = vunpack.c.h.b16 %v1368
        %v1630 = vunpack.c.l.b16 %v1369
        %v1631 = vunpack.c.h.b16 %v1369
        %v1632 = vunpack.c.l.b16 %v1370
        %v1633 = vunpack.c.h.b16 %v1370
        %v1634 = vunpack.c.l.b16 %v1371
        %v1635 = vunpack.c.h.b16 %v1371
        %v1636 = vunpack.c.l.b16 %v1372
        %v1637 = vunpack.c.h.b16 %v1372
        %v1638 = vunpack.c.l.b16 %v1373
        %v1639 = vunpack.c.h.b16 %v1373
        %v1640 = vunpack.c.l.b16 %v1374
        %v1641 = vunpack.c.h.b16 %v1374
        %v1642 = vunpack.c.l.b16 %v1375
        %v1643 = vunpack.c.h.b16 %v1375
        %v1644 = vunpack.c.l.b16 %v1376
        %v1645 = vunpack.c.h.b16 %v1376
        %v1646 = vunpack.c.l.b16 %v1377
        %v1647 = vunpack.c.h.b16 %v1377
        %v1648 = vunpack.c.l.b16 %v1378
        %v1649 = vunpack.c.h.b16 %v1378
        %v1650 = vunpack.c.l.b16 %v1379
        %v1651 = vunpack.c.h.b16 %v1379
        %v1652 = vunpack.c.l.b16 %v1380
        %v1653 = vunpack.c.h.b16 %v1380
        %v1654 = vunpack.c.l.b16 %v1381
        %v1655 = vunpack.c.h.b16 %v1381
        %v1656 = vunpack.c.l.b16 %v1382
        %v1657 = vunpack.c.h.b16 %v1382
        %v1658 = vunpack.c.l.b16 %v1383
        %v1659 = vunpack.c.h.b16 %v1383
        %v1660 = vunpack.c.l.b16 %v1384
        %v1661 = vunpack.c.h.b16 %v1384
        %v1662 = vunpack.c.l.b16 %v1385
        %v1663 = vunpack.c.h.b16 %v1385
        %v1664 = vunpack.c.l.b16 %v1386
        %v1665 = vunpack.c.h.b16 %v1386
        %v1666 = vunpack.c.l.b16 %v1387
        %v1667 = vunpack.c.h.b16 %v1387
        %v1668 = vunpack.c.l.b16 %v1388
        %v1669 = vunpack.c.h.b16 %v1388
        %v1670 = vunpack.c.l.b16 %v1389
        %v1671 = vunpack.c.h.b16 %v1389
        %v1672 = vunpack.c.l.b16 %v1390
        %v1673 = vunpack.c.h.b16 %v1390
        %v1674 = vunpack.c.l.b16 %v1391
        %v1675 = vunpack.c.h.b16 %v1391
        %v1676 = vunpack.c.l.b16 %v1392
        %v1677 = vunpack.c.h.b16 %v1392
        %v1678 = vunpack.c.l.b16 %v1393
        %v1679 = vunpack.c.h.b16 %v1393
        %v1680 = vunpack.c.l.b16 %v1394
        %v1681 = vunpack.c.h.b16 %v1394
        %v1682 = vunpack.c.l.b16 %v1395
        %v1683 = vunpack.c.h.b16 %v1395
        %v1684 = vunpack.c.l.b16 %v1396
        %v1685 = vunpack.c.h.b16 %v1396
        %v1686 = vunpack.c.l.b16 %v1397
        %v1687 = vunpack.c.h.b16 %v1397
        %v1688 = vunpack.c.l.b16 %v1398
        %v1689 = vunpack.c.h.b16 %v1398
        %v1690 = vunpack.c.l.b16 %v1399
        %v1691 = vunpack.c.h.b16 %v1399
        %v1692 = vunpack.c.l.b16 %v1400
        %v1693 = vunpack.c.h.b16 %v1400
        %v1694 = vunpack.c.l.b16 %v1401
        %v1695 = vunpack.c.h.b16 %v1401
        %v1696 = vunpack.c.l.b16 %v1402
        %v1697 = vunpack.c.h.b16 %v1402
        %v1698 = vunpack.c.l.b16 %v1403
        %v1699 = vunpack.c.h.b16 %v1403
        %v1700 = vunpack.c.l.b16 %v1404
        %v1701 = vunpack.c.h.b16 %v1404
        %v1702 = vunpack.c.l.b16 %v1405
        %v1703 = vunpack.c.h.b16 %v1405
        %v1704 = vunpack.c.l.b16 %v1406
        %v1705 = vunpack.c.h.b16 %v1406
        %v1706 = vunpack.c.l.b16 %v1407
        %v1707 = vunpack.c.h.b16 %v1407
        %v1708 = vunpack.c.l.b16 %v1408
        %v1709 = vunpack.c.h.b16 %v1408
        %v1710 = vunpack.c.l.b16 %v1409
        %v1711 = vunpack.c.h.b16 %v1409
        %v1712 = vunpack.c.l.b16 %v1410
        %v1713 = vunpack.c.h.b16 %v1410
        %v1714 = vunpack.c.l.b16 %v1411
        %v1715 = vunpack.c.h.b16 %v1411
        %v1716 = vunpack.c.l.b16 %v1412
        %v1717 = vunpack.c.h.b16 %v1412
        %v1718 = vunpack.c.l.b16 %v1413
        %v1719 = vunpack.c.h.b16 %v1413
        %v1720 = vunpack.c.l.b16 %v1414
        %v1721 = vunpack.c.h.b16 %v1414
        %v1722 = vunpack.c.l.b16 %v1415
        %v1723 = vunpack.c.h.b16 %v1415
        %v1724 = vunpack.c.l.b16 %v1416
        %v1725 = vunpack.c.h.b16 %v1416
        %v1726 = vunpack.c.l.b16 %v1417
        %v1727 = vunpack.c.h.b16 %v1417
        %v1728 = vunpack.c.l.b16 %v1418
        %v1729 = vunpack.c.h.b16 %v1418
        %v1730 = vunpack.c.l.b16 %v1419
        %v1731 = vunpack.c.h.b16 %v1419
        %v1732 = vunpack.c.l.b16 %v1420
        %v1733 = vunpack.c.h.b16 %v1420
        %v1734 = vunpack.c.l.b16 %v1421
        %v1735 = vunpack.c.h.b16 %v1421
        %v1736 = vunpack.c.l.b16 %v1422
        %v1737 = vunpack.c.h.b16 %v1422
        %v1738 = vunpack.c.l.b16 %v1423
        %v1739 = vunpack.c.h.b16 %v1423
        %v1740 = vunpack.c.l.b16 %v1424
        %v1741 = vunpack.c.h.b16 %v1424
        %v1742 = vunpack.c.l.b16 %v1425
        %v1743 = vunpack.c.h.b16 %v1425
        %v1744 = vunpack.c.l.b16 %v1426
        %v1745 = vunpack.c.h.b16 %v1426
        %v1746 = vunpack.c.l.b16 %v1427
        %v1747 = vunpack.c.h.b16 %v1427
        %v1748 = vunpack.c.l.b16 %v1428
        %v1749 = vunpack.c.h.b16 %v1428
        %v1750 = vunpack.c.l.b16 %v1429
        %v1751 = vunpack.c.h.b16 %v1429
        %v1752 = vunpack.c.l.b16 %v1430
        %v1753 = vunpack.c.h.b16 %v1430
        %v1754 = vunpack.c.l.b16 %v1431
        %v1755 = vunpack.c.h.b16 %v1431
        %v1756 = vunpack.c.l.b16 %v1432
        %v1757 = vunpack.c.h.b16 %v1432
        %v1758 = vunpack.c.l.b16 %v1433
        %v1759 = vunpack.c.h.b16 %v1433
        %v1760 = vunpack.c.l.b16 %v1434
        %v1761 = vunpack.c.h.b16 %v1434
        %v1762 = vunpack.c.l.b16 %v1435
        %v1763 = vunpack.c.h.b16 %v1435
        %v1764 = vunpack.c.l.b16 %v1436
        %v1765 = vunpack.c.h.b16 %v1436
        %v1766 = vunpack.c.l.b16 %v1437
        %v1767 = vunpack.c.h.b16 %v1437
        %v1768 = vunpack.c.l.b16 %v1438
        %v1769 = vunpack.c.h.b16 %v1438
        %v1770 = vunpack.c.l.b16 %v1439
        %v1771 = vunpack.c.h.b16 %v1439
        %v1772 = vunpack.c.l.b16 %v1440
        %v1773 = vunpack.c.h.b16 %v1440
        %v1774 = vunpack.c.l.b16 %v1441
        %v1775 = vunpack.c.h.b16 %v1441
        %v1776 = vunpack.c.l.b16 %v1442
        %v1777 = vunpack.c.h.b16 %v1442
        %v1778 = vunpack.c.l.b16 %v1443
        %v1779 = vunpack.c.h.b16 %v1443
        %v1780 = vpack.c.b16 %v1572, %v1564
        %v1781 = vpack.c.b16 %v1573, %v1565
        %v1782 = vpack.c.b16 %v1574, %v1566
        %v1783 = vpack.c.b16 %v1575, %v1567
        %v1784 = vpack.c.b16 %v1576, %v1568
        %v1785 = vpack.c.b16 %v1577, %v1569
        %v1786 = vpack.c.b16 %v1578, %v1570
        %v1787 = vpack.c.b16 %v1579, %v1571
        %v1788 = vpack.c.b16 %v1588, %v1580
        %v1789 = vpack.c.b16 %v1589, %v1581
        %v1790 = vpack.c.b16 %v1590, %v1582
        %v1791 = vpack.c.b16 %v1591, %v1583
        %v1792 = vpack.c.b16 %v1592, %v1584
        %v1793 = vpack.c.b16 %v1593, %v1585
        %v1794 = vpack.c.b16 %v1594, %v1586
        %v1795 = vpack.c.b16 %v1595, %v1587
        %v1796 = vpack.c.b16 %v1604, %v1596
        %v1797 = vpack.c.b16 %v1605, %v1597
        %v1798 = vpack.c.b16 %v1606, %v1598
        %v1799 = vpack.c.b16 %v1607, %v1599
        %v1800 = vpack.c.b16 %v1608, %v1600
        %v1801 = vpack.c.b16 %v1609, %v1601
        %v1802 = vpack.c.b16 %v1610, %v1602
        %v1803 = vpack.c.b16 %v1611, %v1603
        %v1804 = vpack.c.b16 %v1620, %v1612
        %v1805 = vpack.c.b16 %v1621, %v1613
        %v1806 = vpack.c.b16 %v1622, %v1614
        %v1807 = vpack.c.b16 %v1623, %v1615
        %v1808 = vpack.c.b16 %v1624, %v1616
        %v1809 = vpack.c.b16 %v1625, %v1617
        %v1810 = vpack.c.b16 %v1626, %v1618
        %v1811 = vpack.c.b16 %v1627, %v1619
        %v1812 = vpack.c.b16 %v1636, %v1628
        %v1813 = vpack.c.b16 %v1637, %v1629
        %v1814 = vpack.c.b16 %v1638, %v1630
        %v1815 = vpack.c.b16 %v1639, %v1631
        %v1816 = vpack.c.b16 %v1640, %v1632
        %v1817 = vpack.c.b16 %v1641, %v1633
        %v1818 = vpack.c.b16 %v1642, %v1634
        %v1819 = vpack.c.b16 %v1643, %v1635
        %v1820 = vpack.c.b16 %v1652, %v1644
        %v1821 = vpack.c.b16 %v1653, %v1645
        %v1822 = vpack.c.b16 %v1654, %v1646
        %v1823 = vpack.c.b16 %v1655, %v1647
        %v1824 = vpack.c.b16 %v1656, %v1648
        %v1825 = vpack.c.b16 %v1657, %v1649
        %v1826 = vpack.c.b16 %v1658, %v1650
        %v1827 = vpack.c.b16 %v1659, %v1651
        %v1828 = vpack.c.b16 %v1668, %v1660
        %v1829 = vpack.c.b16 %v1669, %v1661
        %v1830 = vpack.c.b16 %v1670, %v1662
        %v1831 = vpack.c.b16 %v1671, %v1663
        %v1832 = vpack.c.b16 %v1672, %v1664
        %v1833 = vpack.c.b16 %v1673, %v1665
        %v1834 = vpack.c.b16 %v1674, %v1666
        %v1835 = vpack.c.b16 %v1675, %v1667
        %v1836 = vpack.c.b16 %v1684, %v1676
        %v1837 = vpack.c.b16 %v1685, %v1677
        %v1838 = vpack.c.b16 %v1686, %v1678
        %v1839 = vpack.c.b16 %v1687, %v1679
        %v1840 = vpack.c.b16 %v1688, %v1680
        %v1841 = vpack.c.b16 %v1689, %v1681
        %v1842 = vpack.c.b16 %v1690, %v1682
        %v1843 = vpack.c.b16 %v1691, %v1683
        %v1844 = vpack.c.b16 %v1700, %v1692
        %v1845 = vpack.c.b16 %v1701, %v1693
        %v1846 = vpack.c.b16 %v1702, %v1694
        %v1847 = vpack.c.b16 %v1703, %v1695
        %v1848 = vpack.c.b16 %v1704, %v1696
        %v1849 = vpack.c.b16 %v1705, %v1697
        %v1850 = vpack.c.b16 %v1706, %v1698
        %v1851 = vpack.c.b16 %v1707, %v1699
        %v1852 = vpack.c.b16 %v1716, %v1708
        %v1853 = vpack.c.b16 %v1717, %v1709
        %v1854 = vpack.c.b16 %v1718, %v1710
        %v1855 = vpack.c.b16 %v1719, %v1711
        %v1856 = vpack.c.b16 %v1720, %v1712
        %v1857 = vpack.c.b16 %v1721, %v1713
        %v1858 = vpack.c.b16 %v1722, %v1714
        %v1859 = vpack.c.b16 %v1723, %v1715
        %v1860 = vpack.c.b16 %v1732, %v1724
        %v1861 = vpack.c.b16 %v1733, %v1725
        %v1862 = vpack.c.b16 %v1734, %v1726
        %v1863 = vpack.c.b16 %v1735, %v1727
        %v1864 = vpack.c.b16 %v1736, %v1728
        %v1865 = vpack.c.b16 %v1737, %v1729
        %v1866 = vpack.c.b16 %v1738, %v1730
        %v1867 = vpack.c.b16 %v1739, %v1731
        %v1868 = vpack.c.b16 %v1748, %v1740
        %v1869 = vpack.c.b16 %v1749, %v1741
        %v1870 = vpack.c.b16 %v1750, %v1742
        %v1871 = vpack.c.b16 %v1751, %v1743
        %v1872 = vpack.c.b16 %v1752, %v1744
        %v1873 = vpack.c.b16 %v1753, %v1745
        %v1874 = vpack.c.b16 %v1754, %v1746
        %v1875 = vpack.c.b16 %v1755, %v1747
        %v1876 = vpack.c.b16 %v1764, %v1756
        %v1877 = vpack.c.b16 %v1765, %v1757
        %v1878 = vpack.c.b16 %v1766, %v1758
        %v1879 = vpack.c.b16 %v1767, %v1759
        %v1880 = vpack.c.b16 %v1768, %v1760
        %v1881 = vpack.c.b16 %v1769, %v1761
        %v1882 = vpack.c.b16 %v1770, %v1762
        %v1883 = vpack.c.b16 %v1771, %v1763
        %v1884 = vpack.c.b16 %v1772, %v1772
        %v1885 = vpack.c.b16 %v1773, %v1773
        %v1886 = vpack.c.b16 %v1774, %v1774
        %v1887 = vpack.c.b16 %v1775, %v1775
        %v1888 = vpack.c.b16 %v1776, %v1776
        %v1889 = vpack.c.b16 %v1777, %v1777
        %v1890 = vpack.c.b16 %v1778, %v1778
        %v1891 = vpack.c.b16 %v1779, %v1779
        %vm1996 = vcmask 719872
        %v1998 = vsel %vm1996, %v1454, 0
        %vm2000 = vcmask 1043456
        %v2002 = vsel %vm2000, %v1884, 0
        %v2005 = vsel %vm2000, %v1885, 0
        %v2008 = vsel %vm2000, %v1886, 0
        %v2011 = vsel %vm2000, %v1887, 0
        %v2014 = vsel %vm2000, %v1888, 0
        %v2017 = vsel %vm2000, %v1889, 0
        %v2020 = vsel %vm2000, %v1890, 0
        %v2023 = vsel %vm2000, %v1891, 0
        %2025 = vmatprep.subr.bf16.mxu0 %v1837
        %2026 = vmatpush1.bf16.msra.mxu0 %v1836
        %2027 = vmatprep.subr.bf16.mxu0 %v1829
        %2028 = vmatpush1.bf16.msra.mxu0 %v1828
        %2029 = vmatprep.subr.bf16.mxu0 %v1821
        %2030 = vmatpush1.bf16.msra.mxu0 %v1820
        %2031 = vmatprep.subr.bf16.mxu0 %v1813
        %2032 = vmatpush1.bf16.msra.mxu0 %v1812
        %2033 = vmatprep.subr.bf16.mxu0 %v1805
        %2034 = vmatpush1.bf16.msra.mxu0 %v1804
        %2035 = vmatprep.subr.bf16.mxu0 %v1797
        %2036 = vmatpush1.bf16.msra.mxu0 %v1796
        %2037 = vmatprep.subr.bf16.mxu0 %v1789
        %2038 = vmatpush1.bf16.msra.mxu0 %v1788
        %2039 = vmatprep.subr.bf16.mxu0 %v1781
        %2040 = vmatpush1.bf16.msra.mxu0 %v1780
        %2041 = vmatprep.subr.bf16.mxu0 0
        %2042 = vmatpush2.bf16.msra.mxu0 0
        %2043 = vmatprep.subr.bf16.mxu0 0
        %2044 = vmatpush2.bf16.msra.mxu0 0
        %2045 = vmatprep.subr.bf16.mxu0 %v2005
        %2046 = vmatpush2.bf16.msra.mxu0 %v2002
        %2047 = vmatprep.subr.bf16.mxu0 %v1877
        %2048 = vmatpush2.bf16.msra.mxu0 %v1876
        %2049 = vmatprep.subr.bf16.mxu0 %v1869
        %2050 = vmatpush2.bf16.msra.mxu0 %v1868
        %2051 = vmatprep.subr.bf16.mxu0 %v1861
        %2052 = vmatpush2.bf16.msra.mxu0 %v1860
        %2053 = vmatprep.subr.bf16.mxu0 %v1853
        %2054 = vmatpush2.bf16.msra.mxu0 %v1852
        %2055 = vmatprep.subr.bf16.mxu0 %v1845
        %2056 = vmatpush2.bf16.msra.mxu0 %v1844
        %2057 = vmatprep.mubr.bf16.mxu0 %v1998
        %2058 = vmatmul.mubr.bf16.gmra.mxu0 %v1453
        %v2059 = vpop.f32.mrf.mxu0
        %v2060 = vadd.f32 %v1448, %v2059
        %v2061 = vpop.f32.mrf.mxu0
        %v2062 = vadd.f32 %v1448, %v2061
        %v2063 = vpop.f32.mrf.mxu0
        %v2064 = vpop.f32.mrf.mxu0
        %2065 = vdwg.mxu0
        %2066 = vmatprep.subr.bf16.mxu0 %v1839
        %2067 = vmatpush1.bf16.msra.mxu0 %v1838
        %2068 = vmatprep.subr.bf16.mxu0 %v1831
        %2069 = vmatpush1.bf16.msra.mxu0 %v1830
        %2070 = vmatprep.subr.bf16.mxu0 %v1823
        %2071 = vmatpush1.bf16.msra.mxu0 %v1822
        %2072 = vmatprep.subr.bf16.mxu0 %v1815
        %2073 = vmatpush1.bf16.msra.mxu0 %v1814
        %2074 = vmatprep.subr.bf16.mxu0 %v1807
        %2075 = vmatpush1.bf16.msra.mxu0 %v1806
        %2076 = vmatprep.subr.bf16.mxu0 %v1799
        %2077 = vmatpush1.bf16.msra.mxu0 %v1798
        %2078 = vmatprep.subr.bf16.mxu0 %v1791
        %2079 = vmatpush1.bf16.msra.mxu0 %v1790
        %2080 = vmatprep.subr.bf16.mxu0 %v1783
        %2081 = vmatpush1.bf16.msra.mxu0 %v1782
        %2082 = vmatprep.subr.bf16.mxu0 0
        %2083 = vmatpush2.bf16.msra.mxu0 0
        %2084 = vmatprep.subr.bf16.mxu0 0
        %2085 = vmatpush2.bf16.msra.mxu0 0
        %2086 = vmatprep.subr.bf16.mxu0 %v2011
        %2087 = vmatpush2.bf16.msra.mxu0 %v2008
        %2088 = vmatprep.subr.bf16.mxu0 %v1879
        %2089 = vmatpush2.bf16.msra.mxu0 %v1878
        %2090 = vmatprep.subr.bf16.mxu0 %v1871
        %2091 = vmatpush2.bf16.msra.mxu0 %v1870
        %2092 = vmatprep.subr.bf16.mxu0 %v1863
        %2093 = vmatpush2.bf16.msra.mxu0 %v1862
        %2094 = vmatprep.subr.bf16.mxu0 %v1855
        %2095 = vmatpush2.bf16.msra.mxu0 %v1854
        %2096 = vmatprep.subr.bf16.mxu0 %v1847
        %2097 = vmatpush2.bf16.msra.mxu0 %v1846
        %2098 = vmatprep.mubr.bf16.mxu0 %v1998
        %2099 = vmatmul.mubr.bf16.gmra.mxu0 %v1453
        %v2100 = vpop.f32.mrf.mxu0
        %v2101 = vadd.f32 %v1448, %v2100
        %v2102 = vpop.f32.mrf.mxu0
        %v2103 = vadd.f32 %v1448, %v2102
        %v2104 = vpop.f32.mrf.mxu0
        %v2105 = vpop.f32.mrf.mxu0
        %2106 = vdwg.mxu0
        %2107 = vmatprep.subr.bf16.mxu0 %v1841
        %2108 = vmatpush1.bf16.msra.mxu0 %v1840
        %2109 = vmatprep.subr.bf16.mxu0 %v1833
        %2110 = vmatpush1.bf16.msra.mxu0 %v1832
        %2111 = vmatprep.subr.bf16.mxu0 %v1825
        %2112 = vmatpush1.bf16.msra.mxu0 %v1824
        %2113 = vmatprep.subr.bf16.mxu0 %v1817
        %2114 = vmatpush1.bf16.msra.mxu0 %v1816
        %2115 = vmatprep.subr.bf16.mxu0 %v1809
        %2116 = vmatpush1.bf16.msra.mxu0 %v1808
        %2117 = vmatprep.subr.bf16.mxu0 %v1801
        %2118 = vmatpush1.bf16.msra.mxu0 %v1800
        %2119 = vmatprep.subr.bf16.mxu0 %v1793
        %2120 = vmatpush1.bf16.msra.mxu0 %v1792
        %2121 = vmatprep.subr.bf16.mxu0 %v1785
        %2122 = vmatpush1.bf16.msra.mxu0 %v1784
        %2123 = vmatprep.subr.bf16.mxu0 0
        %2124 = vmatpush2.bf16.msra.mxu0 0
        %2125 = vmatprep.subr.bf16.mxu0 0
        %2126 = vmatpush2.bf16.msra.mxu0 0
        %2127 = vmatprep.subr.bf16.mxu0 %v2017
        %2128 = vmatpush2.bf16.msra.mxu0 %v2014
        %2129 = vmatprep.subr.bf16.mxu0 %v1881
        %2130 = vmatpush2.bf16.msra.mxu0 %v1880
        %2131 = vmatprep.subr.bf16.mxu0 %v1873
        %2132 = vmatpush2.bf16.msra.mxu0 %v1872
        %2133 = vmatprep.subr.bf16.mxu0 %v1865
        %2134 = vmatpush2.bf16.msra.mxu0 %v1864
        %2135 = vmatprep.subr.bf16.mxu0 %v1857
        %2136 = vmatpush2.bf16.msra.mxu0 %v1856
        %2137 = vmatprep.subr.bf16.mxu0 %v1849
        %2138 = vmatpush2.bf16.msra.mxu0 %v1848
        %2139 = vmatprep.mubr.bf16.mxu0 %v1998
        %2140 = vmatmul.mubr.bf16.gmra.mxu0 %v1453
        %v2141 = vpop.f32.mrf.mxu0
        %v2142 = vadd.f32 %v1448, %v2141
        %v2143 = vpop.f32.mrf.mxu0
        %v2144 = vadd.f32 %v1448, %v2143
        %v2145 = vpop.f32.mrf.mxu0
        %v2146 = vpop.f32.mrf.mxu0
        %2147 = vdwg.mxu0
        %2148 = vmatprep.subr.bf16.mxu0 %v1843
        %2149 = vmatpush1.bf16.msra.mxu0 %v1842
        %2150 = vmatprep.subr.bf16.mxu0 %v1835
        %2151 = vmatpush1.bf16.msra.mxu0 %v1834
        %2152 = vmatprep.subr.bf16.mxu0 %v1827
        %2153 = vmatpush1.bf16.msra.mxu0 %v1826
        %2154 = vmatprep.subr.bf16.mxu0 %v1819
        %2155 = vmatpush1.bf16.msra.mxu0 %v1818
        %2156 = vmatprep.subr.bf16.mxu0 %v1811
        %2157 = vmatpush1.bf16.msra.mxu0 %v1810
        %2158 = vmatprep.subr.bf16.mxu0 %v1803
        %2159 = vmatpush1.bf16.msra.mxu0 %v1802
        %2160 = vmatprep.subr.bf16.mxu0 %v1795
        %2161 = vmatpush1.bf16.msra.mxu0 %v1794
        %2162 = vmatprep.subr.bf16.mxu0 %v1787
        %2163 = vmatpush1.bf16.msra.mxu0 %v1786
        %2164 = vmatprep.subr.bf16.mxu0 0
        %2165 = vmatpush2.bf16.msra.mxu0 0
        %2166 = vmatprep.subr.bf16.mxu0 0
        %2167 = vmatpush2.bf16.msra.mxu0 0
        %2168 = vmatprep.subr.bf16.mxu0 %v2023
        %2169 = vmatpush2.bf16.msra.mxu0 %v2020
        %2170 = vmatprep.subr.bf16.mxu0 %v1883
        %2171 = vmatpush2.bf16.msra.mxu0 %v1882
        %2172 = vmatprep.subr.bf16.mxu0 %v1875
        %2173 = vmatpush2.bf16.msra.mxu0 %v1874
        %2174 = vmatprep.subr.bf16.mxu0 %v1867
        %2175 = vmatpush2.bf16.msra.mxu0 %v1866
        %2176 = vmatprep.subr.bf16.mxu0 %v1859
        %2177 = vmatpush2.bf16.msra.mxu0 %v1858
        %2178 = vmatprep.subr.bf16.mxu0 %v1851
        %2179 = vmatpush2.bf16.msra.mxu0 %v1850
        %2180 = vmatprep.mubr.bf16.mxu0 %v1998
        %2181 = vmatmul.mubr.bf16.gmra.mxu0 %v1453
        %v2182 = vpop.f32.mrf.mxu0
        %v2183 = vadd.f32 %v1448, %v2182
        %v2184 = vpop.f32.mrf.mxu0
        %v2185 = vadd.f32 %v1448, %v2184
        %v2186 = vpop.f32.mrf.mxu0
        %v2187 = vpop.f32.mrf.mxu0
        %2188 = vdwg.mxu0
        %vm2189 = vcmp.gt.f32.partialorder %v2060, 0.0
        %vm2190 = vcmp.gt.f32.partialorder %v2062, 0.0
        %vm2191 = vcmp.gt.f32.partialorder %v2101, 0.0
        %vm2192 = vcmp.gt.f32.partialorder %v2103, 0.0
        %vm2193 = vcmp.gt.f32.partialorder %v2142, 0.0
        %vm2194 = vcmp.gt.f32.partialorder %v2144, 0.0
        %vm2195 = vcmp.gt.f32.partialorder %v2183, 0.0
        %vm2196 = vcmp.gt.f32.partialorder %v2185, 0.0
        %v2197 = vld [vmem:[%s3] sm:$0xff]
        %2199 = vset.pattern.permute.xlu0 0
        %2200 = vperm.xlu0 %2199, %v2197
        %v2201 = vpop.permute.xlu0 %2200
        %v2203 = vmul.f32 %v2060, %v2201
        %v2204 = vmul.f32 %v2062, %v2201
        %v2205 = vmul.f32 %v2101, %v2201
        %v2206 = vmul.f32 %v2103, %v2201
        %v2207 = vmul.f32 %v2142, %v2201
        %v2208 = vmul.f32 %v2144, %v2201
        %v2209 = vmul.f32 %v2183, %v2201
        %v2210 = vmul.f32 %v2185, %v2201
        %v2211 = vsel %vm2189, %v2060, %v2203
        %v2212 = vsel %vm2190, %v2062, %v2204
        %v2213 = vsel %vm2191, %v2101, %v2205
        %v2214 = vsel %vm2192, %v2103, %v2206
        %v2215 = vsel %vm2193, %v2142, %v2207
        %v2216 = vsel %vm2194, %v2144, %v2208
        %v2217 = vsel %vm2195, %v2183, %v2209
        %v2218 = vsel %vm2196, %v2185, %v2210
        %2219 = vst [vmem:[%s231] sm:$0xff] %v2211
        %2220 = vst [vmem:[%s231 + $0x8] sm:$0xff] %v2212
        %2221 = vst [vmem:[%s231 + $0x10] sm:$0xff] %v2213
        %2222 = vst [vmem:[%s231 + $0x18] sm:$0xff] %v2214
        %2223 = vst [vmem:[%s231 + $0x20] sm:$0xff] %v2215
        %2224 = vst [vmem:[%s231 + $0x28] sm:$0xff] %v2216
        %2225 = vst [vmem:[%s231 + $0x30] sm:$0xff] %v2217
        %2226 = vst [vmem:[%s231 + $0x38] sm:$0xff] %v2218
        %s2227 = sand.u32 %s134, 1
        %s2228 = scalar_lea.sflag [#allocation5], %s2227
        %s2229 = sand.u32 %s134, 1
        %s2230 = smul.addr %s2229, 64
        %s2231 = scalar_lea.vmem [#allocation6], %s2230
        // Predicated region
        $region41: #{tpu_custom_call.1} parent=35 // pred_check
          %p2232 = pneg %p144
        $region42: #{tpu_custom_call.1} parent=35 // pred_check_branch
          %2234 = sbr.rel (%p2232) target = $region44
        $region43: #{tpu_custom_call.1} parent=35 // pred_region
          %s2235 = smul.u32 8, %s26
          %s2237 = ssub.s32 1024, 1024
          %2238 = vsyncadd %s2228, %s2237
          %s2239 = smul.addr %s25, 8
          %s2240 = sadd.s32 %s2235, %s2239
          %s2241 = smul.addr %s2240, 128
          %s2242 = scalar_lea.hbm %s4, %s2241
          %s2244 = sshll.u32 %s2231, 4
          %s2245 = int_to_ptr.vmem [resolvable:$true] %s2244
          %2247 = dma.vmem_to_hbm [thread:$0]  %s2245, 1024, %s2242, %s2228
        $region44: #{tpu_custom_call.1} parent=35 // pred_fallthru
          _
      $region36: #{tpu_custom_call.1} parent=5 // pred_fallthru
        _
      %p2248 = scmp.le.s32.totalorder 2, %s16
      // Predicated region
      $region45: #{tpu_custom_call.1} parent=5 // pred_check
        %p2249 = pneg %p2248
      $region46: #{tpu_custom_call.1} parent=5 // pred_check_branch
        %2251 = sbr.rel (%p2249) target = $region48
      $region47: #{tpu_custom_call.1} parent=5 // pred_region
        %s2252 = ssub.s32 %s16, 2
        // Predicated region
        $region49: #{tpu_custom_call.1} parent=47 // pred_check
          %p2253 = pneg %p150
        $region50: #{tpu_custom_call.1} parent=47 // pred_check_branch
          %2255 = sbr.rel (%p2253) target = $region52
        $region51: #{tpu_custom_call.1} parent=47 // pred_region
          %s2256 = sand.u32 %s135, 1
          %s2257 = scalar_lea.sflag [#allocation5], %s2256
          %s2258 = sand.u32 %s135, 1
          %s2259 = smul.addr %s2258, 64
          %s2260 = scalar_lea.vmem [#allocation6], %s2259
          %2261 = dma.done %s2257, 1024
        $region52: #{tpu_custom_call.1} parent=47 // pred_fallthru
          _
      $region48: #{tpu_custom_call.1} parent=5 // pred_fallthru
        _
    $region6: #{tpu_custom_call.1} parent=1 // loop_footer
      %s20 = sadd.s32 1, %s16
    $region7: #{tpu_custom_call.1} parent=1 // loop_footer_branch
      %15 = sbr.rel target = $region3
    $region8: #{tpu_custom_call.1} parent=1 // loop_exit
      _
    %2262 = vsyncpa [#allocation4], 1
    %s2263 = scalar_lea.sflag [#allocation4], 1
    %2264 = vsyncpa %s2263, 1
    %2265 = vsyncpa [#allocation5], 1
    %s2266 = scalar_lea.sflag [#allocation5], 1
    %2267 = vsyncpa %s2266, 1

</llo_original>
